<compile_context>
chip_gen: v7x
topology: tpu7x:2x2x1
jax: 0.10.0
libtpu: 0.0.40
codegen_flags: <defaults>
</compile_context>

<pallas_src>
import jax
import jax.numpy as jnp
from jax.experimental import pallas as pl
from jax.experimental.pallas import tpu as pltpu


def _round_up(x, m):
    return (x + m - 1) // m * m


# ----------------------------------------------------------------------------
# Fused kernel. Grid = (T, N_pad // tile_n, N_pad // tile_k); all 'arbitrary'
# (the evolving-weight scratch makes execution inherently sequential).
#
# Inputs  : A (tile_n, tile_k) bf16 tile, X_t (N_pad, F_pad) f32,
#           W0 (F_pad, F_pad) f32, Wcat (F_pad, 4F_pad) f32, bcat (1, 4F_pad).
# Outputs : out_t row tile (tile_n, F_pad) f32, W_T (F_pad, F_pad) f32.
# Scratch : evolving W (f32), X_t @ W_t (bf16), k-accumulator (f32).
# ----------------------------------------------------------------------------
def _evolve_gcno_seq_kernel(a_ref, x_ref, w0_ref, wcat_ref, bcat_ref,
                            out_ref, wt_ref, w_sc, xw_sc, acc_sc):
    t, i, k = pl.program_id(0), pl.program_id(1), pl.program_id(2)
    f_pad = w_sc.shape[0]
    tile_k = a_ref.shape[1]

    # ---- timestep prologue: evolve W with the GRU, compute X_t @ W_t once --
    @pl.when(jnp.logical_and(i == 0, k == 0))
    def _():
        @pl.when(t == 0)
        def _():
            w_sc[...] = w0_ref[...]
        w_prev = w_sc[...]
        # One wide MXU dot covers all gates (x == h; r/z weights pre-folded).
        g = jnp.dot(w_prev, wcat_ref[...],
                    preferred_element_type=jnp.float32) + bcat_ref[...]
        r = jax.nn.sigmoid(g[:, 0 * f_pad:1 * f_pad])
        z = jax.nn.sigmoid(g[:, 1 * f_pad:2 * f_pad])
        n = jnp.tanh(g[:, 2 * f_pad:3 * f_pad] + r * g[:, 3 * f_pad:4 * f_pad])
        w_new = (1.0 - z) * n + z * w_prev
        w_sc[...] = w_new                 # carried state across timesteps
        wt_ref[...] = w_new               # revisited block; HBM write at end
        xw_sc[...] = jnp.dot(x_ref[...], w_new,
                             preferred_element_type=jnp.float32
                             ).astype(xw_sc.dtype)

    # ---- aggregation: out[i] = sum_k A[i, k] @ XW[k] (bf16 x bf16 -> f32) --
    @pl.when(k == 0)
    def _():
        acc_sc[...] = jnp.zeros_like(acc_sc)

    start = pl.multiple_of(k * tile_k, tile_k)
    acc_sc[...] += jnp.dot(a_ref[...], xw_sc[pl.ds(start, tile_k), :],
                           preferred_element_type=jnp.float32)

    @pl.when(k == pl.num_programs(2) - 1)
    def _():
        out_ref[...] = acc_sc[...].astype(out_ref.dtype)


def evolve_gcno_sequence_pallas(a_norm, x_seq, w_state, w_cat_pad, b_cat_pad,
                                *, tile_n=256, tile_k=256):
    """Fused EvolveGCNO over a sequence: returns (out[T, N, F], W_T[F, F])."""
    T, N, F = x_seq.shape
    f_pad = w_cat_pad.shape[1] // 4

    # Tile / pad the node dimension (keeps per-step VMEM N-independent while
    # giving the pipeline >= a few steps per timestep at moderate N).
    tile_n = min(tile_n, _round_up(N, 128))
    tile_k = min(tile_k, _round_up(N, 128))
    n_pad = _round_up(N, max(tile_n, tile_k))

    a_p = jnp.zeros((n_pad, n_pad), jnp.bfloat16).at[:N, :N].set(
        a_norm.astype(jnp.bfloat16))
    x_p = jnp.zeros((T, n_pad, f_pad), jnp.float32).at[:, :N, :F].set(x_seq)
    w0_p = jnp.zeros((f_pad, f_pad), jnp.float32).at[:F, :F].set(w_state)

    grid = (T, n_pad // tile_n, n_pad // tile_k)

    out_p, w_t = pl.pallas_call(
        _evolve_gcno_seq_kernel,
        out_shape=(jax.ShapeDtypeStruct((T, n_pad, f_pad), jnp.float32),
                   jax.ShapeDtypeStruct((f_pad, f_pad), jnp.float32)),
        grid_spec=pltpu.PrefetchScalarGridSpec(
            num_scalar_prefetch=0,
            grid=grid,
            in_specs=[
                pl.BlockSpec((tile_n, tile_k), lambda t, i, k: (i, k)),        # A
                pl.BlockSpec((None, n_pad, f_pad), lambda t, i, k: (t, 0, 0)),  # X_t
                pl.BlockSpec((f_pad, f_pad), lambda t, i, k: (0, 0)),           # W0
                pl.BlockSpec((f_pad, 4 * f_pad), lambda t, i, k: (0, 0)),       # GRU W
                pl.BlockSpec((1, 4 * f_pad), lambda t, i, k: (0, 0)),           # GRU b
            ],
            out_specs=(
                pl.BlockSpec((None, tile_n, f_pad), lambda t, i, k: (t, i, 0)),
                pl.BlockSpec((f_pad, f_pad), lambda t, i, k: (0, 0)),
            ),
            scratch_shapes=[
                pltpu.VMEM((f_pad, f_pad), jnp.float32),    # evolving W state
                pltpu.VMEM((n_pad, f_pad), jnp.bfloat16),   # X_t @ W_t
                pltpu.VMEM((tile_n, f_pad), jnp.float32),   # k-tile accumulator
            ]),
        # Sequential grid: W scratch / xw scratch carry state across steps.
        compiler_params=pltpu.CompilerParams(
            dimension_semantics=("arbitrary", "arbitrary", "arbitrary")),
    )(a_p, x_p, w0_p, w_cat_pad, b_cat_pad)

    return out_p[:, :N, :F], w_t[:F, :F]


@jax.jit
def evolve_gcno_forward_sequence(x_seq, a_norm, w_state, w_cat_pad, b_cat_pad):
    """T consecutive EvolveGCNO forward steps in one kernel launch."""
    return evolve_gcno_sequence_pallas(a_norm, x_seq, w_state,
                                       w_cat_pad, b_cat_pad)


# ----------------------------------------------------------------------------
# Plain-JAX glue: dense gcn_norm — graph preprocessing, computed ONCE per
# graph (it does not depend on the evolving weight), reused every timestep.
# ----------------------------------------------------------------------------
def gcn_norm_dense(edge_index, edge_weight, num_nodes):
    src, dst = edge_index[0], edge_index[1]
    if edge_weight is None:
        edge_weight = jnp.ones(src.shape, jnp.float32)
    a_hat = jnp.zeros((num_nodes, num_nodes), jnp.float32)
    a_hat = a_hat.at[dst, src].add(edge_weight)            # A[target, source]
    a_hat = a_hat + jnp.eye(num_nodes, dtype=jnp.float32)  # self loops, fill=1
    deg = a_hat.sum(axis=1)                                # in-degree (+1)
    dinv = jnp.where(deg > 0, 1.0 / jnp.sqrt(deg), 0.0)
    return dinv[:, None] * a_hat * dinv[None, :]


# ----------------------------------------------------------------------------
# Parameter init (PyTorch GRU layout) + packing for the fused kernel.
# ----------------------------------------------------------------------------
def init_raw_params(key, in_channels, out_channels):
    assert in_channels == out_channels, "EvolveGCNO uses a square evolving W"
    F = in_channels
    k0, k1, k2, k3, k4 = jax.random.split(key, 5)
    a = jnp.sqrt(6.0 / (F + F))                        # glorot for (1, F, F)
    initial_weight = jax.random.uniform(k0, (1, F, F), jnp.float32, -a, a)
    s = 1.0 / jnp.sqrt(F)
    w_ih = jax.random.uniform(k1, (3 * F, F), jnp.float32, -s, s)
    w_hh = jax.random.uniform(k2, (3 * F, F), jnp.float32, -s, s)
    b_ih = jax.random.uniform(k3, (3 * F,), jnp.float32, -s, s)
    b_hh = jax.random.uniform(k4, (3 * F,), jnp.float32, -s, s)
    return initial_weight, (w_ih, w_hh, b_ih, b_hh)


def pack_gru_params(w_ih, w_hh, b_ih, b_hh, f_pad):
    """Pack PyTorch GRU params into lane-padded (F_pad, 4*F_pad) / (1, 4*F_pad).

    Since x == h in EvolveGCNO, the r and z input/hidden weights (and biases)
    are folded: gates = [Wir+Whr | Wiz+Whz | Win | Whn].
    """
    F = w_ih.shape[1]
    wir, wiz, win = (w_ih[i * F:(i + 1) * F].T for i in range(3))
    whr, whz, whn = (w_hh[i * F:(i + 1) * F].T for i in range(3))
    bir, biz, bin_ = (b_ih[i * F:(i + 1) * F] for i in range(3))
    bhr, bhz, bhn = (b_hh[i * F:(i + 1) * F] for i in range(3))
    gates_w = [wir + whr, wiz + whz, win, whn]
    gates_b = [bir + bhr, biz + bhz, bin_, bhn]
    w_cat = jnp.zeros((f_pad, 4 * f_pad), jnp.float32)
    b_cat = jnp.zeros((1, 4 * f_pad), jnp.float32)
    for g, (wg, bg) in enumerate(zip(gates_w, gates_b)):
        w_cat = w_cat.at[:F, g * f_pad:g * f_pad + F].set(wg)
        b_cat = b_cat.at[0, g * f_pad:g * f_pad + F].set(bg)
    return w_cat, b_cat


# ----------------------------------------------------------------------------
# Pure-JAX reference (raw PyTorch-layout params) for correctness.
# ----------------------------------------------------------------------------
def reference_gru_step(w_state, raw_gru):
    w_ih, w_hh, b_ih, b_hh = raw_gru
    F = w_ih.shape[1]
    wir, wiz, win = (w_ih[i * F:(i + 1) * F].T for i in range(3))
    whr, whz, whn = (w_hh[i * F:(i + 1) * F].T for i in range(3))
    bir, biz, bin_ = (b_ih[i * F:(i + 1) * F] for i in range(3))
    bhr, bhz, bhn = (b_hh[i * F:(i + 1) * F] for i in range(3))
    x = h = w_state
    r = jax.nn.sigmoid(x @ wir + bir + h @ whr + bhr)
    z = jax.nn.sigmoid(x @ wiz + biz + h @ whz + bhz)
    n = jnp.tanh(x @ win + bin_ + r * (h @ whn + bhn))
    return (1.0 - z) * n + z * h


def reference_sequence(x_seq, a_norm, w_state, raw_gru):
    w = w_state
    outs = []
    for t in range(x_seq.shape[0]):
        w = reference_gru_step(w, raw_gru)
        outs.append(a_norm @ (x_seq[t] @ w))
    return jnp.stack(outs, axis=0), w


if __name__ == "__main__":
    F = 32            # in_channels == out_channels
    N = 128           # number of nodes
    T = 8             # timesteps batched into one kernel launch

    key = jax.random.PRNGKey(0)
    k_x, k_p, k_w = jax.random.split(key, 3)

    initial_weight, raw_gru = init_raw_params(k_p, F, F)
    F_PAD = _round_up(F, 128)
    w_cat_pad, b_cat_pad = pack_gru_params(*raw_gru, f_pad=F_PAD)

    x_seq = jax.random.normal(k_x, (T, N, F), jnp.float32)

    # synthetic undirected ring + skip graph (no explicit self loops)
    src = jnp.arange(N, dtype=jnp.int32)
    dst1 = (src + 1) % N
    dst2 = (src + 5) % N
    edge_src = jnp.concatenate([src, dst1, src, dst2])
    edge_dst = jnp.concatenate([dst1, src, dst2, src])
    edge_index = jnp.stack([edge_src, edge_dst], axis=0)
    edge_weight = jax.random.uniform(k_w, (edge_index.shape[1],), jnp.float32,
                                     0.5, 1.5)

    # gcn_norm depends only on the graph -> compute once and cache.
    a_norm = jax.block_until_ready(gcn_norm_dense(edge_index, edge_weight, N))

    # --- fused kernel over the whole sequence -------------------------------
    w0 = initial_weight[0]
    out, w_T = evolve_gcno_forward_sequence(x_seq, a_norm, w0,
                                            w_cat_pad, b_cat_pad)
    out = jax.block_until_ready(out)
    w_T = jax.block_until_ready(w_T)

    # --- reference ----------------------------------------------------------
    ref_out, ref_w_T = reference_sequence(x_seq, a_norm, w0, raw_gru)

    assert out.shape == (T, N, F)
    # Weight evolution is full f32 -> tight tolerance across all T steps.
    assert jnp.allclose(w_T, ref_w_T, rtol=1e-4, atol=1e-4), "W_T mismatch"
    # Aggregation uses bf16 A_norm / bf16 XW (f32 accumulation) -> loosened.
    scale = float(jnp.max(jnp.abs(ref_out)))
    max_err = float(jnp.max(jnp.abs(out - ref_out)))
    assert max_err <= 0.02 * scale + 1e-4, (
        f"node output mismatch: max_err={max_err}, scale={scale}")

    print("KERNEL_OK")
</pallas_src>

<mosaic_0001>
module attributes {stable_mosaic.version = 11 : i64} {
  func.func @_evolve_gcno_seq_kernel(%arg0: i32, %arg1: i32, %arg2: i32, %arg3: memref<128x128xbf16, #tpu.memory_space<vmem>>, %arg4: memref<1x128x128xf32, #tpu.memory_space<vmem>>, %arg5: memref<128x128xf32, #tpu.memory_space<vmem>>, %arg6: memref<128x512xf32, #tpu.memory_space<vmem>>, %arg7: memref<1x512xf32, #tpu.memory_space<vmem>>, %arg8: memref<1x128x128xf32, #tpu.memory_space<vmem>>, %arg9: memref<128x128xf32, #tpu.memory_space<vmem>>, %arg10: memref<128x128xf32, #tpu.memory_space<vmem>>, %arg11: memref<128x128xbf16, #tpu.memory_space<vmem>>, %arg12: memref<128x128xf32, #tpu.memory_space<vmem>>) attributes {dimension_semantics = [#tpu.dimension_semantics<arbitrary>, #tpu.dimension_semantics<arbitrary>, #tpu.dimension_semantics<arbitrary>], iteration_bounds = array<i64: 8, 1, 1>, scalar_prefetch = 0 : i64, scratch_operands = 3 : i64, tpu.core_type = #tpu.core_type<tc>, window_params = [{transform_indices = @transform_0, window_bounds = array<i64: 128, 128>}, {transform_indices = @transform_1, window_bounds = array<i64: 1, 128, 128>}, {pipeline_mode = #tpu.pipeline_mode<synchronous>, transform_indices = @transform_2, window_bounds = array<i64: 128, 128>}, {pipeline_mode = #tpu.pipeline_mode<synchronous>, transform_indices = @transform_3, window_bounds = array<i64: 128, 512>}, {pipeline_mode = #tpu.pipeline_mode<synchronous>, transform_indices = @transform_4, window_bounds = array<i64: 1, 512>}, {transform_indices = @transform_5, window_bounds = array<i64: 1, 128, 128>}, {pipeline_mode = #tpu.pipeline_mode<synchronous>, transform_indices = @transform_6, window_bounds = array<i64: 128, 128>}]} {
    %c0_i32 = arith.constant 0 : i32
    %0 = arith.cmpi eq, %arg1, %c0_i32 : i32
    %c0_i32_0 = arith.constant 0 : i32
    %1 = arith.cmpi eq, %arg2, %c0_i32_0 : i32
    %2 = arith.andi %0, %1 : i1
    %3 = arith.extui %2 : i1 to i32
    %c0_i32_1 = arith.constant 0 : i32
    %4 = arith.cmpi ne, %3, %c0_i32_1 : i32
    scf.if %4 {
      %c0_i32_12 = arith.constant 0 : i32
      %20 = arith.cmpi eq, %arg0, %c0_i32_12 : i32
      %21 = arith.extui %20 : i1 to i32
      %c0_i32_13 = arith.constant 0 : i32
      %22 = arith.cmpi ne, %21, %c0_i32_13 : i32
      scf.if %22 {
        %c0_34 = arith.constant 0 : index
        %c0_35 = arith.constant 0 : index
        %58 = vector.load %arg5[%c0_34, %c0_35] : memref<128x128xf32, #tpu.memory_space<vmem>>, vector<128x128xf32>
        %c0_36 = arith.constant 0 : index
        %c0_37 = arith.constant 0 : index
        %59 = vector.load %arg10[%c0_36, %c0_37] : memref<128x128xf32, #tpu.memory_space<vmem>>, vector<128x128xf32>
        tpu.vector_store %arg10[%c0_36, %c0_37], %58 {strides = array<i32>} : memref<128x128xf32, #tpu.memory_space<vmem>>, vector<128x128xf32>,
      } else {
      }
      %c0_14 = arith.constant 0 : index
      %c0_15 = arith.constant 0 : index
      %23 = vector.load %arg10[%c0_14, %c0_15] : memref<128x128xf32, #tpu.memory_space<vmem>>, vector<128x128xf32>
      %c0_16 = arith.constant 0 : index
      %c0_17 = arith.constant 0 : index
      %24 = vector.load %arg6[%c0_16, %c0_17] : memref<128x512xf32, #tpu.memory_space<vmem>>, vector<128x512xf32>
      %cst_18 = arith.constant dense<0.000000e+00> : vector<128x512xf32>
      %25 = tpu.matmul %23, %24, %cst_18 {dimension_numbers = #tpu.dot_dimension_numbers<[1], [0], [0], [1], [0, 0, 1, 1], [], []>} : vector<128x128xf32>, vector<128x512xf32>, vector<128x512xf32> -> vector<128x512xf32>
      %c0_19 = arith.constant 0 : index
      %c0_20 = arith.constant 0 : index
      %26 = vector.load %arg7[%c0_19, %c0_20] : memref<1x512xf32, #tpu.memory_space<vmem>>, vector<1x512xf32>
      %27 = vector.broadcast %26 : vector<1x512xf32> to vector<128x512xf32>
      %28 = arith.addf %25, %27 : vector<128x512xf32>
      %29 = vector.extract_strided_slice %28 {offsets = [0, 0], sizes = [128, 128], strides = [1, 1]} : vector<128x512xf32> to vector<128x128xf32>
      %30 = arith.negf %29 : vector<128x128xf32>
      %31 = math.exp %30 : vector<128x128xf32>
      %cst_21 = arith.constant 1.000000e+00 : f32
      %32 = vector.broadcast %cst_21 : f32 to vector<128x128xf32>
      %33 = arith.addf %32, %31 : vector<128x128xf32>
      %34 = arith.divf %32, %33 : vector<128x128xf32>
      %35 = vector.extract_strided_slice %28 {offsets = [0, 128], sizes = [128, 128], strides = [1, 1]} : vector<128x512xf32> to vector<128x128xf32>
      %36 = arith.negf %35 : vector<128x128xf32>
      %37 = math.exp %36 : vector<128x128xf32>
      %cst_22 = arith.constant 1.000000e+00 : f32
      %38 = vector.broadcast %cst_22 : f32 to vector<128x128xf32>
      %39 = arith.addf %38, %37 : vector<128x128xf32>
      %40 = arith.divf %38, %39 : vector<128x128xf32>
      %41 = vector.extract_strided_slice %28 {offsets = [0, 256], sizes = [128, 128], strides = [1, 1]} : vector<128x512xf32> to vector<128x128xf32>
      %42 = vector.extract_strided_slice %28 {offsets = [0, 384], sizes = [128, 128], strides = [1, 1]} : vector<128x512xf32> to vector<128x128xf32>
      %43 = arith.mulf %34, %42 : vector<128x128xf32>
      %44 = arith.addf %41, %43 : vector<128x128xf32>
      %45 = math.tanh %44 : vector<128x128xf32>
      %cst_23 = arith.constant 1.000000e+00 : f32
      %46 = vector.broadcast %cst_23 : f32 to vector<128x128xf32>
      %47 = arith.subf %46, %40 : vector<128x128xf32>
      %48 = arith.mulf %47, %45 : vector<128x128xf32>
      %49 = arith.mulf %40, %23 : vector<128x128xf32>
      %50 = arith.addf %48, %49 : vector<128x128xf32>
      %c0_24 = arith.constant 0 : index
      %c0_25 = arith.constant 0 : index
      %51 = vector.load %arg10[%c0_24, %c0_25] : memref<128x128xf32, #tpu.memory_space<vmem>>, vector<128x128xf32>
      tpu.vector_store %arg10[%c0_24, %c0_25], %50 {strides = array<i32>} : memref<128x128xf32, #tpu.memory_space<vmem>>, vector<128x128xf32>,
      %c0_26 = arith.constant 0 : index
      %c0_27 = arith.constant 0 : index
      %52 = vector.load %arg9[%c0_26, %c0_27] : memref<128x128xf32, #tpu.memory_space<vmem>>, vector<128x128xf32>
      tpu.vector_store %arg9[%c0_26, %c0_27], %50 {strides = array<i32>} : memref<128x128xf32, #tpu.memory_space<vmem>>, vector<128x128xf32>,
      %c0_28 = arith.constant 0 : index
      %c0_29 = arith.constant 0 : index
      %c0_30 = arith.constant 0 : index
      %53 = vector.load %arg4[%c0_28, %c0_29, %c0_30] : memref<1x128x128xf32, #tpu.memory_space<vmem>>, vector<1x128x128xf32>
      %54 = vector.shape_cast %53 : vector<1x128x128xf32> to vector<128x128xf32>
      %cst_31 = arith.constant dense<0.000000e+00> : vector<128x128xf32>
      %55 = tpu.matmul %54, %50, %cst_31 {dimension_numbers = #tpu.dot_dimension_numbers<[1], [0], [0], [1], [0, 0, 1, 1], [], []>} : vector<128x128xf32>, vector<128x128xf32>, vector<128x128xf32> -> vector<128x128xf32>
      %56 = arith.truncf %55 : vector<128x128xf32> to vector<128x128xbf16>
      %c0_32 = arith.constant 0 : index
      %c0_33 = arith.constant 0 : index
      %57 = vector.load %arg11[%c0_32, %c0_33] : memref<128x128xbf16, #tpu.memory_space<vmem>>, vector<128x128xbf16>
      tpu.vector_store %arg11[%c0_32, %c0_33], %56 {strides = array<i32>} : memref<128x128xbf16, #tpu.memory_space<vmem>>, vector<128x128xbf16>,
    } else {
    }
    %c0_i32_2 = arith.constant 0 : i32
    %5 = arith.cmpi eq, %arg2, %c0_i32_2 : i32
    %6 = arith.extui %5 : i1 to i32
    %c0_i32_3 = arith.constant 0 : i32
    %7 = arith.cmpi ne, %6, %c0_i32_3 : i32
    scf.if %7 {
      %cst_12 = arith.constant 0.000000e+00 : f32
      %20 = vector.broadcast %cst_12 : f32 to vector<128x128xf32>
      %c0_13 = arith.constant 0 : index
      %c0_14 = arith.constant 0 : index
      %21 = vector.load %arg12[%c0_13, %c0_14] : memref<128x128xf32, #tpu.memory_space<vmem>>, vector<128x128xf32>
      tpu.vector_store %arg12[%c0_13, %c0_14], %20 {strides = array<i32>} : memref<128x128xf32, #tpu.memory_space<vmem>>, vector<128x128xf32>,
    } else {
    }
    %c128_i32 = arith.constant 128 : i32
    %8 = arith.muli %arg2, %c128_i32 : i32
    %9 = tpu.assume_multiple %8, 128 : i32
    %c0 = arith.constant 0 : index
    %c0_4 = arith.constant 0 : index
    %10 = vector.load %arg12[%c0, %c0_4] : memref<128x128xf32, #tpu.memory_space<vmem>>, vector<128x128xf32>
    %c0_5 = arith.constant 0 : index
    %c0_6 = arith.constant 0 : index
    %11 = vector.load %arg3[%c0_5, %c0_6] : memref<128x128xbf16, #tpu.memory_space<vmem>>, vector<128x128xbf16>
    %12 = arith.index_cast %9 : i32 to index
    %c0_7 = arith.constant 0 : index
    %13 = vector.load %arg11[%12, %c0_7] : memref<128x128xbf16, #tpu.memory_space<vmem>>, vector<128x128xbf16>
    %cst = arith.constant dense<0.000000e+00> : vector<128x128xf32>
    %14 = tpu.matmul %11, %13, %cst {dimension_numbers = #tpu.dot_dimension_numbers<[1], [0], [0], [1], [0, 0, 1, 1], [], []>} : vector<128x128xbf16>, vector<128x128xbf16>, vector<128x128xf32> -> vector<128x128xf32>
    %15 = arith.addf %10, %14 : vector<128x128xf32>
    %c0_8 = arith.constant 0 : index
    %c0_9 = arith.constant 0 : index
    %16 = vector.load %arg12[%c0_8, %c0_9] : memref<128x128xf32, #tpu.memory_space<vmem>>, vector<128x128xf32>
    tpu.vector_store %arg12[%c0_8, %c0_9], %15 {strides = array<i32>} : memref<128x128xf32, #tpu.memory_space<vmem>>, vector<128x128xf32>,
    %c0_i32_10 = arith.constant 0 : i32
    %17 = arith.cmpi eq, %arg2, %c0_i32_10 : i32
    %18 = arith.extui %17 : i1 to i32
    %c0_i32_11 = arith.constant 0 : i32
    %19 = arith.cmpi ne, %18, %c0_i32_11 : i32
    scf.if %19 {
      %c0_12 = arith.constant 0 : index
      %c0_13 = arith.constant 0 : index
      %20 = vector.load %arg12[%c0_12, %c0_13] : memref<128x128xf32, #tpu.memory_space<vmem>>, vector<128x128xf32>
      %c0_14 = arith.constant 0 : index
      %c0_15 = arith.constant 0 : index
      %c0_16 = arith.constant 0 : index
      %21 = vector.load %arg8[%c0_14, %c0_15, %c0_16] : memref<1x128x128xf32, #tpu.memory_space<vmem>>, vector<1x128x128xf32>
      %22 = vector.shape_cast %21 : vector<1x128x128xf32> to vector<128x128xf32>
      %23 = vector.shape_cast %20 : vector<128x128xf32> to vector<1x128x128xf32>
      tpu.vector_store %arg8[%c0_14, %c0_15, %c0_16], %23 {strides = array<i32>} : memref<1x128x128xf32, #tpu.memory_space<vmem>>, vector<1x128x128xf32>,
    } else {
    }
    return
  }
  func.func @transform_0(%arg0: i32, %arg1: i32, %arg2: i32) -> (i32, i32) {
    %c0_i32 = arith.constant 0 : i32
    return %arg1, %arg2 : i32, i32
  }
  func.func @transform_1(%arg0: i32, %arg1: i32, %arg2: i32) -> (i32, i32, i32) {
    %c0_i32 = arith.constant 0 : i32
    %c0_i32_0 = arith.constant 0 : i32
    %c0_i32_1 = arith.constant 0 : i32
    return %arg0, %c0_i32, %c0_i32_0 : i32, i32, i32
  }
  func.func @transform_2(%arg0: i32, %arg1: i32, %arg2: i32) -> (i32, i32) {
    %c0_i32 = arith.constant 0 : i32
    %c0_i32_0 = arith.constant 0 : i32
    %c0_i32_1 = arith.constant 0 : i32
    return %c0_i32, %c0_i32_0 : i32, i32
  }
  func.func @transform_3(%arg0: i32, %arg1: i32, %arg2: i32) -> (i32, i32) {
    %c0_i32 = arith.constant 0 : i32
    %c0_i32_0 = arith.constant 0 : i32
    %c0_i32_1 = arith.constant 0 : i32
    return %c0_i32, %c0_i32_0 : i32, i32
  }
  func.func @transform_4(%arg0: i32, %arg1: i32, %arg2: i32) -> (i32, i32) {
    %c0_i32 = arith.constant 0 : i32
    %c0_i32_0 = arith.constant 0 : i32
    %c0_i32_1 = arith.constant 0 : i32
    return %c0_i32, %c0_i32_0 : i32, i32
  }
  func.func @transform_5(%arg0: i32, %arg1: i32, %arg2: i32) -> (i32, i32, i32) {
    %c0_i32 = arith.constant 0 : i32
    %c0_i32_0 = arith.constant 0 : i32
    return %arg0, %arg1, %c0_i32 : i32, i32, i32
  }
  func.func @transform_6(%arg0: i32, %arg1: i32, %arg2: i32) -> (i32, i32) {
    %c0_i32 = arith.constant 0 : i32
    %c0_i32_0 = arith.constant 0 : i32
    %c0_i32_1 = arith.constant 0 : i32
    return %c0_i32, %c0_i32_0 : i32, i32
  }
}

</mosaic_0001>

<llo_original>
// kernel: evolve_gcno_forward_sequence.1
$region0: #{evolve_gcno_forward_sequence.1}
  #allocation0 [shape = 'u32[]', space=smem, size = 0x4, offset = 0x4, fixed_abs, tag = 'smem constant byte address 0x4 - core index']
  #allocation1 [shape = 'u32[144,128]{1,0:T(1,128)}', space=vmem, size = 0x12000, scoped, tag = 'internal scratch']
  #allocation2 [shape = 'f32[128,128]{1,0:T(8,128)}', space=vmem, size = 0x10000, scoped, tag = 'scratch operand']
  #allocation3 [shape = 'bf16[128,128]{1,0:T(16,128)(2,1)}', space=vmem, size = 0x8000, scoped, tag = 'scratch operand']
  #allocation4 [shape = 'f32[128,128]{1,0:T(8,128)}', space=vmem, size = 0x10000, scoped, tag = 'scratch operand']
  %s0 = inlined_call_operand.vmem [shape: bf16[128,128], index: 0, kind: input, shape index: {}]
  %s1 = inlined_call_operand.vmem [shape: f32[8,128,128], index: 1, kind: input, shape index: {}]
  %s2 = inlined_call_operand.vmem [shape: f32[128,128], index: 2, kind: input, shape index: {}]
  %s3 = inlined_call_operand.vmem [shape: f32[128,512], index: 3, kind: input, shape index: {}]
  %s4 = inlined_call_operand.vmem [shape: f32[1,512], index: 4, kind: input, shape index: {}]
  %s5 = inlined_call_operand.vmem [shape: f32[8,128,128], index: 5, kind: output, shape index: {0}]
  %s6 = inlined_call_operand.vmem [shape: f32[128,128], index: 6, kind: output, shape index: {1}]
  %7 = xla_tuple %s5, %s6
  %s8 = sld [smem:[#allocation0]]
  $region77: #{evolve_gcno_forward_sequence.1} parent=0
    _
  %s10 = ssub.s32 1, %s8
  %s11 = scalar_select 0, %s10, %s8
  loop: start=0, step=1, limit=10
  $region2: #{evolve_gcno_forward_sequence.1} parent=0 // loop_pre_header
    _
  $region3: #{evolve_gcno_forward_sequence.1} parent=0 // loop_header
    %s13 = sphi 0, %s17
    %p14 = scmp.ge.s32.totalorder %s13, 10
    %s20 = sphi 0, %s39
    %s21 = sphi 0, %s35
    %s22 = sphi 0, %s31
    %s23 = sphi 0, %s20
    %s24 = sphi 0, %s21
    %s25 = sphi 0, %s22
    %s26 = sphi 0, %s23
    %s27 = sphi 0, %s24
    %s28 = sphi 0, %s25
    %s44 = sphi 0, %s46
    %s47 = sphi 0, %s44
    %s48 = sphi 0, %s47
    %s64 = sphi 0, %s48
    %s70 = sphi 0, %s72
    %s73 = sphi 0, %s70
    %s74 = sphi 0, %s73
    %s90 = sphi 0, %s74
    %s94 = sphi 0, %s94
    %s96 = sphi 0, %s94
    %s97 = sphi 0, %s96
    %s111 = sphi 0, %s97
    %s115 = sphi 0, %s115
    %s117 = sphi 0, %s115
    %s118 = sphi 0, %s117
    %s132 = sphi 0, %s118
    %s136 = sphi 0, %s136
    %s138 = sphi 0, %s136
    %s139 = sphi 0, %s138
    %s153 = sphi 0, %s139
    %s161 = sphi 0, %s163
    %s164 = sphi 0, %s161
    %s165 = sphi 0, %s164
    %s181 = sphi 0, %s165
    %s185 = sphi 0, %s185
    %s187 = sphi 0, %s185
    %s188 = sphi 0, %s187
    %s202 = sphi 0, %s188
  $region4: #{evolve_gcno_forward_sequence.1} parent=0 // loop_header_branch
    %16 = sbr.rel (%p14) target = $region8
  $region5: #{evolve_gcno_forward_sequence.1} parent=0 // loop_body
    %s18 = ssub.s32 %s13, 1
    %s19 = ssub.s32 %s13, 2
    %s29 = sadd.s32 1, %s22
    %p30 = scmp.ge.s32.totalorder %s29, 1
    %s31 = scalar_select %p30, 0, %s29
    %s32 = sadd.s32 1, %s21
    %s33 = scalar_select %p30, %s32, %s21
    %p34 = scmp.ge.s32.totalorder %s33, 1
    %s35 = scalar_select %p34, 0, %s33
    %s36 = sadd.s32 1, %s20
    %s37 = scalar_select %p34, %s36, %s20
    %p38 = scmp.ge.s32.totalorder %s37, 8
    %s39 = scalar_select %p38, 0, %s37
    %s40 = ssub.s32 %s21, %s35
    %s41 = ssub.s32 %s22, %s31
    %s42 = sor.u32 %s40, %s41
    %p43 = scmp.eq.s32.totalorder %s42, 0
    %s45 = sadd.s32 %s44, 1
    %s46 = scalar_select %p43, %s44, %s45
    %p49 = pneg %p43
    %p50 = scmp.eq.s32.totalorder %s13, 7
    %p51 = por %p49, %p50
    %p52 = scmp.ne.s32.totalorder %s44, %s47
    %p53 = scmp.eq.s32.totalorder %s13, 0
    %p54 = por %p52, %p53
    %p55 = scmp.ne.s32.totalorder %s44, %s47
    %p56 = scmp.eq.s32.totalorder %s18, 7
    %p57 = por %p55, %p56
    %p58 = scmp.ne.s32.totalorder %s47, %s48
    %p59 = scmp.eq.s32.totalorder %s18, 0
    %p60 = por %p58, %p59
    %p61 = scmp.ne.s32.totalorder %s47, %s48
    %p62 = scmp.eq.s32.totalorder %s19, 7
    %p63 = por %p61, %p62
    %p65 = scmp.ne.s32.totalorder %s48, %s64
    %p66 = scmp.eq.s32.totalorder %s19, 0
    %p67 = por %p65, %p66
    %s68 = ssub.s32 %s20, %s39
    %p69 = scmp.eq.s32.totalorder %s68, 0
    %s71 = sadd.s32 %s70, 1
    %s72 = scalar_select %p69, %s70, %s71
    %p75 = pneg %p69
    %p76 = scmp.eq.s32.totalorder %s13, 7
    %p77 = por %p75, %p76
    %p78 = scmp.ne.s32.totalorder %s70, %s73
    %p79 = scmp.eq.s32.totalorder %s13, 0
    %p80 = por %p78, %p79
    %p81 = scmp.ne.s32.totalorder %s70, %s73
    %p82 = scmp.eq.s32.totalorder %s18, 7
    %p83 = por %p81, %p82
    %p84 = scmp.ne.s32.totalorder %s73, %s74
    %p85 = scmp.eq.s32.totalorder %s18, 0
    %p86 = por %p84, %p85
    %p87 = scmp.ne.s32.totalorder %s73, %s74
    %p88 = scmp.eq.s32.totalorder %s19, 7
    %p89 = por %p87, %p88
    %p91 = scmp.ne.s32.totalorder %s74, %s90
    %p92 = scmp.eq.s32.totalorder %s19, 0
    %p93 = por %p91, %p92
    %s95 = sadd.s32 %s94, 1
    %p98 = scmp.eq.s32.totalorder %s13, 7
    %p99 = scmp.ne.s32.totalorder %s94, %s96
    %p100 = scmp.eq.s32.totalorder %s13, 0
    %p101 = por %p99, %p100
    %p102 = scmp.ne.s32.totalorder %s94, %s96
    %p103 = scmp.eq.s32.totalorder %s18, 7
    %p104 = por %p102, %p103
    %p105 = scmp.ne.s32.totalorder %s96, %s97
    %p106 = scmp.eq.s32.totalorder %s18, 0
    %p107 = por %p105, %p106
    %p108 = scmp.ne.s32.totalorder %s96, %s97
    %p109 = scmp.eq.s32.totalorder %s19, 7
    %p110 = por %p108, %p109
    %p112 = scmp.ne.s32.totalorder %s97, %s111
    %p113 = scmp.eq.s32.totalorder %s19, 0
    %p114 = por %p112, %p113
    %s116 = sadd.s32 %s115, 1
    %p119 = scmp.eq.s32.totalorder %s13, 7
    %p120 = scmp.ne.s32.totalorder %s115, %s117
    %p121 = scmp.eq.s32.totalorder %s13, 0
    %p122 = por %p120, %p121
    %p123 = scmp.ne.s32.totalorder %s115, %s117
    %p124 = scmp.eq.s32.totalorder %s18, 7
    %p125 = por %p123, %p124
    %p126 = scmp.ne.s32.totalorder %s117, %s118
    %p127 = scmp.eq.s32.totalorder %s18, 0
    %p128 = por %p126, %p127
    %p129 = scmp.ne.s32.totalorder %s117, %s118
    %p130 = scmp.eq.s32.totalorder %s19, 7
    %p131 = por %p129, %p130
    %p133 = scmp.ne.s32.totalorder %s118, %s132
    %p134 = scmp.eq.s32.totalorder %s19, 0
    %p135 = por %p133, %p134
    %s137 = sadd.s32 %s136, 1
    %p140 = scmp.eq.s32.totalorder %s13, 7
    %p141 = scmp.ne.s32.totalorder %s136, %s138
    %p142 = scmp.eq.s32.totalorder %s13, 0
    %p143 = por %p141, %p142
    %p144 = scmp.ne.s32.totalorder %s136, %s138
    %p145 = scmp.eq.s32.totalorder %s18, 7
    %p146 = por %p144, %p145
    %p147 = scmp.ne.s32.totalorder %s138, %s139
    %p148 = scmp.eq.s32.totalorder %s18, 0
    %p149 = por %p147, %p148
    %p150 = scmp.ne.s32.totalorder %s138, %s139
    %p151 = scmp.eq.s32.totalorder %s19, 7
    %p152 = por %p150, %p151
    %p154 = scmp.ne.s32.totalorder %s139, %s153
    %p155 = scmp.eq.s32.totalorder %s19, 0
    %p156 = por %p154, %p155
    %s157 = ssub.s32 %s20, %s39
    %s158 = ssub.s32 %s21, %s35
    %s159 = sor.u32 %s157, %s158
    %p160 = scmp.eq.s32.totalorder %s159, 0
    %s162 = sadd.s32 %s161, 1
    %s163 = scalar_select %p160, %s161, %s162
    %p166 = pneg %p160
    %p167 = scmp.eq.s32.totalorder %s13, 7
    %p168 = por %p166, %p167
    %p169 = scmp.ne.s32.totalorder %s161, %s164
    %p170 = scmp.eq.s32.totalorder %s13, 0
    %p171 = por %p169, %p170
    %p172 = scmp.ne.s32.totalorder %s161, %s164
    %p173 = scmp.eq.s32.totalorder %s18, 7
    %p174 = por %p172, %p173
    %p175 = scmp.ne.s32.totalorder %s164, %s165
    %p176 = scmp.eq.s32.totalorder %s18, 0
    %p177 = por %p175, %p176
    %p178 = scmp.ne.s32.totalorder %s164, %s165
    %p179 = scmp.eq.s32.totalorder %s19, 7
    %p180 = por %p178, %p179
    %p182 = scmp.ne.s32.totalorder %s165, %s181
    %p183 = scmp.eq.s32.totalorder %s19, 0
    %p184 = por %p182, %p183
    %s186 = sadd.s32 %s185, 1
    %p189 = scmp.eq.s32.totalorder %s13, 7
    %p190 = scmp.ne.s32.totalorder %s185, %s187
    %p191 = scmp.eq.s32.totalorder %s13, 0
    %p192 = por %p190, %p191
    %p193 = scmp.ne.s32.totalorder %s185, %s187
    %p194 = scmp.eq.s32.totalorder %s18, 7
    %p195 = por %p193, %p194
    %p196 = scmp.ne.s32.totalorder %s187, %s188
    %p197 = scmp.eq.s32.totalorder %s18, 0
    %p198 = por %p196, %p197
    %p199 = scmp.ne.s32.totalorder %s187, %s188
    %p200 = scmp.eq.s32.totalorder %s19, 7
    %p201 = por %p199, %p200
    %p203 = scmp.ne.s32.totalorder %s188, %s202
    %p204 = scmp.eq.s32.totalorder %s19, 0
    %p205 = por %p203, %p204
    %p206 = scmp.le.s32.totalorder 1, %s13
    %p207 = scmp.lt.s32.totalorder %s13, 9
    %p208 = pnand %p206, %p207
    %p209 = pneg %p208
    // Predicated region
    $region9: #{evolve_gcno_forward_sequence.1} parent=5 // pred_check
      _
    $region10: #{evolve_gcno_forward_sequence.1} parent=5 // pred_check_branch
      %211 = sbr.rel (%p208) target = $region12
    $region11: #{evolve_gcno_forward_sequence.1} parent=5 // pred_region
      %s212 = ssub.s32 %s13, 1
      // Predicated region
      $region13: #{evolve_gcno_forward_sequence.1} parent=11 // pred_check
        %p213 = pneg %p60
      $region14: #{evolve_gcno_forward_sequence.1} parent=11 // pred_check_branch
        %215 = sbr.rel (%p213) target = $region16
      $region15: #{evolve_gcno_forward_sequence.1} parent=11 // pred_region
        %s216 = smul.u32 16, %s24
        %p217 = scmp.lt.s32.totalorder %s216, 15
        %s218 = scalar_select %p217, %s216, 15
        %p219 = scmp.lt.s32.totalorder %s25, 0
        %s220 = scalar_select %p219, %s25, 0
        %s221 = sadd.s32 %s220, %s218
        %s222 = smul.addr %s221, 4
        %s223 = scalar_lea.vmem %s0, %s222
        %s224 = smul.u32 16, %s24
      $region16: #{evolve_gcno_forward_sequence.1} parent=11 // pred_fallthru
        _
      // Predicated region
      $region17: #{evolve_gcno_forward_sequence.1} parent=11 // pred_check
        %p225 = pneg %p107
      $region18: #{evolve_gcno_forward_sequence.1} parent=11 // pred_check_branch
        %227 = sbr.rel (%p225) target = $region20
      $region19: #{evolve_gcno_forward_sequence.1} parent=11 // pred_region
        _
      $region20: #{evolve_gcno_forward_sequence.1} parent=11 // pred_fallthru
        _
      // Predicated region
      $region21: #{evolve_gcno_forward_sequence.1} parent=11 // pred_check
        %p228 = pneg %p128
      $region22: #{evolve_gcno_forward_sequence.1} parent=11 // pred_check_branch
        %230 = sbr.rel (%p228) target = $region24
      $region23: #{evolve_gcno_forward_sequence.1} parent=11 // pred_region
        _
      $region24: #{evolve_gcno_forward_sequence.1} parent=11 // pred_fallthru
        _
      // Predicated region
      $region25: #{evolve_gcno_forward_sequence.1} parent=11 // pred_check
        %p231 = pneg %p149
      $region26: #{evolve_gcno_forward_sequence.1} parent=11 // pred_check_branch
        %233 = sbr.rel (%p231) target = $region28
      $region27: #{evolve_gcno_forward_sequence.1} parent=11 // pred_region
        _
      $region28: #{evolve_gcno_forward_sequence.1} parent=11 // pred_fallthru
        _
    $region12: #{evolve_gcno_forward_sequence.1} parent=5 // pred_fallthru
      _
    %p234 = scmp.lt.s32.totalorder %s13, 8
    // Predicated region
    $region29: #{evolve_gcno_forward_sequence.1} parent=5 // pred_check
      %p235 = pneg %p234
    $region30: #{evolve_gcno_forward_sequence.1} parent=5 // pred_check_branch
      %237 = sbr.rel (%p235) target = $region32
    $region31: #{evolve_gcno_forward_sequence.1} parent=5 // pred_region
      // Predicated region
      $region33: #{evolve_gcno_forward_sequence.1} parent=31 // pred_check
        %p238 = pneg %p80
      $region34: #{evolve_gcno_forward_sequence.1} parent=31 // pred_check_branch
        %240 = sbr.rel (%p238) target = $region36
      $region35: #{evolve_gcno_forward_sequence.1} parent=31 // pred_region
        %p241 = scmp.lt.s32.totalorder %s20, 7
        %s242 = scalar_select %p241, %s20, 7
        %s243 = smul.addr %s242, 16
        %s244 = smul.addr %s243, 8
        %s245 = scalar_lea.vmem %s1, %s244
      $region36: #{evolve_gcno_forward_sequence.1} parent=31 // pred_fallthru
        _
    $region32: #{evolve_gcno_forward_sequence.1} parent=5 // pred_fallthru
      _
    %p246 = scmp.le.s32.totalorder 1, %s13
    %p247 = scmp.lt.s32.totalorder %s13, 9
    %p248 = pnand %p246, %p247
    %p249 = pneg %p248
    // Predicated region
    $region37: #{evolve_gcno_forward_sequence.1} parent=5 // pred_check
      _
    $region38: #{evolve_gcno_forward_sequence.1} parent=5 // pred_check_branch
      %251 = sbr.rel (%p248) target = $region40
    $region39: #{evolve_gcno_forward_sequence.1} parent=5 // pred_region
      %s252 = ssub.s32 %s13, 1
      %s253 = smul.u32 16, %s24
      %p254 = scmp.lt.s32.totalorder %s253, 15
      %s255 = scalar_select %p254, %s253, 15
      %p256 = scmp.lt.s32.totalorder %s25, 0
      %s257 = scalar_select %p256, %s25, 0
      %s258 = sadd.s32 %s257, %s255
      %s259 = smul.addr %s258, 4
      %s260 = scalar_lea.vmem %s0, %s259
      %p261 = pneg %p60
      %p262 = pneg %p57
      %p263 = scmp.lt.s32.totalorder %s23, 7
      %s264 = scalar_select %p263, %s23, 7
      %s265 = smul.addr %s264, 16
      %s266 = smul.addr %s265, 8
      %s267 = scalar_lea.vmem %s1, %s266
      %p268 = pneg %p86
      %p269 = pneg %p83
      %p270 = pneg %p107
      %p271 = pneg %p104
      %p272 = pneg %p128
      %p273 = pneg %p125
      %p274 = pneg %p149
      %p275 = pneg %p146
      %p276 = pneg %p177
      %p277 = pneg %p174
      %s278 = smul.u32 16, %s24
      %p279 = scmp.lt.s32.totalorder %s23, 7
      %s280 = scalar_select %p279, %s23, 7
      %p281 = scmp.lt.s32.totalorder %s278, 15
      %s282 = scalar_select %p281, %s278, 15
      %s283 = smul.addr %s280, 16
      %s284 = sadd.s32 %s282, %s283
      %s285 = smul.addr %s284, 8
      %s286 = scalar_lea.vmem %s5, %s285
      %p287 = pneg %p198
      %p288 = pneg %p195
      %s289 = smul.u32 16, %s24
      %p290 = scmp.lt.s32.totalorder %s289, 15
      %s291 = scalar_select %p290, %s289, 15
      %p292 = scmp.lt.s32.totalorder %s25, 0
      %s293 = scalar_select %p292, %s25, 0
      %s294 = sadd.s32 %s293, %s291
      %s295 = smul.addr %s294, 4
      %s296 = scalar_lea.vmem %s0, %s295
      %s297 = smul.u32 16, %s24
      %p298 = scmp.lt.s32.totalorder %s23, 7
      %s299 = scalar_select %p298, %s23, 7
      %s300 = smul.addr %s299, 16
      %s301 = smul.addr %s300, 8
      %s302 = scalar_lea.vmem %s1, %s301
      %s303 = smul.u32 16, %s24
      %p304 = scmp.lt.s32.totalorder %s23, 7
      %s305 = scalar_select %p304, %s23, 7
      %p306 = scmp.lt.s32.totalorder %s303, 15
      %s307 = scalar_select %p306, %s303, 15
      %s308 = smul.addr %s305, 16
      %s309 = sadd.s32 %s307, %s308
      %s310 = smul.addr %s309, 8
      %s311 = scalar_lea.vmem %s5, %s310
      %s312 = smul.u32 16, %s24
      %p314 = scmp.eq.s32.totalorder %s24, 0
      %p315 = scmp.eq.s32.totalorder %s25, 0
      %p316 = pnand %p314, %p315
      %p317 = pneg %p316
      // Predicated region
      $region41: #{evolve_gcno_forward_sequence.1} parent=39 // pred_check
        _
      $region42: #{evolve_gcno_forward_sequence.1} parent=39 // pred_check_branch
        %319 = sbr.rel (%p316) target = $region44
      $region43: #{evolve_gcno_forward_sequence.1} parent=39 // pred_region
        %p320 = scmp.eq.s32.totalorder %s23, 0
        // Predicated region
        $region45: #{evolve_gcno_forward_sequence.1} parent=43 // pred_check
          %p321 = pneg %p320
        $region46: #{evolve_gcno_forward_sequence.1} parent=43 // pred_check_branch
          %323 = sbr.rel (%p321) target = $region48
        $region47: #{evolve_gcno_forward_sequence.1} parent=43 // pred_region
          %v324 = vld [vmem:[%s2] sm:$0xff]
          %v325 = vld [vmem:[%s2 + $0x8] sm:$0xff]
          %v326 = vld [vmem:[%s2 + $0x10] sm:$0xff]
          %v327 = vld [vmem:[%s2 + $0x18] sm:$0xff]
          %v328 = vld [vmem:[%s2 + $0x20] sm:$0xff]
          %v329 = vld [vmem:[%s2 + $0x28] sm:$0xff]
          %v330 = vld [vmem:[%s2 + $0x30] sm:$0xff]
          %v331 = vld [vmem:[%s2 + $0x38] sm:$0xff]
          %v332 = vld [vmem:[%s2 + $0x40] sm:$0xff]
          %v333 = vld [vmem:[%s2 + $0x48] sm:$0xff]
          %v334 = vld [vmem:[%s2 + $0x50] sm:$0xff]
          %v335 = vld [vmem:[%s2 + $0x58] sm:$0xff]
          %v336 = vld [vmem:[%s2 + $0x60] sm:$0xff]
          %v337 = vld [vmem:[%s2 + $0x68] sm:$0xff]
          %v338 = vld [vmem:[%s2 + $0x70] sm:$0xff]
          %v339 = vld [vmem:[%s2 + $0x78] sm:$0xff]
          %340 = vst [vmem:[#allocation2] sm:$0xff] %v324
          %341 = vst [vmem:[#allocation2 + $0x8] sm:$0xff] %v325
          %342 = vst [vmem:[#allocation2 + $0x10] sm:$0xff] %v326
          %343 = vst [vmem:[#allocation2 + $0x18] sm:$0xff] %v327
          %344 = vst [vmem:[#allocation2 + $0x20] sm:$0xff] %v328
          %345 = vst [vmem:[#allocation2 + $0x28] sm:$0xff] %v329
          %346 = vst [vmem:[#allocation2 + $0x30] sm:$0xff] %v330
          %347 = vst [vmem:[#allocation2 + $0x38] sm:$0xff] %v331
          %348 = vst [vmem:[#allocation2 + $0x40] sm:$0xff] %v332
          %349 = vst [vmem:[#allocation2 + $0x48] sm:$0xff] %v333
          %350 = vst [vmem:[#allocation2 + $0x50] sm:$0xff] %v334
          %351 = vst [vmem:[#allocation2 + $0x58] sm:$0xff] %v335
          %352 = vst [vmem:[#allocation2 + $0x60] sm:$0xff] %v336
          %353 = vst [vmem:[#allocation2 + $0x68] sm:$0xff] %v337
          %354 = vst [vmem:[#allocation2 + $0x70] sm:$0xff] %v338
          %355 = vst [vmem:[#allocation2 + $0x78] sm:$0xff] %v339
        $region48: #{evolve_gcno_forward_sequence.1} parent=43 // pred_fallthru
          _
        %v356 = vld [vmem:[#allocation2] sm:$0xff]
        %v357 = vld [vmem:[#allocation2 + $0x8] sm:$0xff]
        %v358 = vld [vmem:[#allocation2 + $0x10] sm:$0xff]
        %v359 = vld [vmem:[#allocation2 + $0x18] sm:$0xff]
        %v360 = vld [vmem:[#allocation2 + $0x20] sm:$0xff]
        %v361 = vld [vmem:[#allocation2 + $0x28] sm:$0xff]
        %v362 = vld [vmem:[#allocation2 + $0x30] sm:$0xff]
        %v363 = vld [vmem:[#allocation2 + $0x38] sm:$0xff]
        %v364 = vld [vmem:[#allocation2 + $0x40] sm:$0xff]
        %v365 = vld [vmem:[#allocation2 + $0x48] sm:$0xff]
        %v366 = vld [vmem:[#allocation2 + $0x50] sm:$0xff]
        %v367 = vld [vmem:[#allocation2 + $0x58] sm:$0xff]
        %v368 = vld [vmem:[#allocation2 + $0x60] sm:$0xff]
        %v369 = vld [vmem:[#allocation2 + $0x68] sm:$0xff]
        %v370 = vld [vmem:[#allocation2 + $0x70] sm:$0xff]
        %v371 = vld [vmem:[#allocation2 + $0x78] sm:$0xff]
        %v372 = vld [vmem:[%s3] sm:$0xff]
        %v373 = vld [vmem:[%s3 + $0x8] sm:$0xff]
        %v374 = vld [vmem:[%s3 + $0x10] sm:$0xff]
        %v375 = vld [vmem:[%s3 + $0x18] sm:$0xff]
        %v376 = vld [vmem:[%s3 + $0x20] sm:$0xff]
        %v377 = vld [vmem:[%s3 + $0x28] sm:$0xff]
        %v378 = vld [vmem:[%s3 + $0x30] sm:$0xff]
        %v379 = vld [vmem:[%s3 + $0x38] sm:$0xff]
        %v380 = vld [vmem:[%s3 + $0x40] sm:$0xff]
        %v381 = vld [vmem:[%s3 + $0x48] sm:$0xff]
        %v382 = vld [vmem:[%s3 + $0x50] sm:$0xff]
        %v383 = vld [vmem:[%s3 + $0x58] sm:$0xff]
        %v384 = vld [vmem:[%s3 + $0x60] sm:$0xff]
        %v385 = vld [vmem:[%s3 + $0x68] sm:$0xff]
        %v386 = vld [vmem:[%s3 + $0x70] sm:$0xff]
        %v387 = vld [vmem:[%s3 + $0x78] sm:$0xff]
        %v388 = vld [vmem:[%s3 + $0x80] sm:$0xff]
        %v389 = vld [vmem:[%s3 + $0x88] sm:$0xff]
        %v390 = vld [vmem:[%s3 + $0x90] sm:$0xff]
        %v391 = vld [vmem:[%s3 + $0x98] sm:$0xff]
        %v392 = vld [vmem:[%s3 + $0xa0] sm:$0xff]
        %v393 = vld [vmem:[%s3 + $0xa8] sm:$0xff]
        %v394 = vld [vmem:[%s3 + $0xb0] sm:$0xff]
        %v395 = vld [vmem:[%s3 + $0xb8] sm:$0xff]
        %v396 = vld [vmem:[%s3 + $0xc0] sm:$0xff]
        %v397 = vld [vmem:[%s3 + $0xc8] sm:$0xff]
        %v398 = vld [vmem:[%s3 + $0xd0] sm:$0xff]
        %v399 = vld [vmem:[%s3 + $0xd8] sm:$0xff]
        %v400 = vld [vmem:[%s3 + $0xe0] sm:$0xff]
        %v401 = vld [vmem:[%s3 + $0xe8] sm:$0xff]
        %v402 = vld [vmem:[%s3 + $0xf0] sm:$0xff]
        %v403 = vld [vmem:[%s3 + $0xf8] sm:$0xff]
        %v404 = vld [vmem:[%s3 + $0x100] sm:$0xff]
        %v405 = vld [vmem:[%s3 + $0x108] sm:$0xff]
        %v406 = vld [vmem:[%s3 + $0x110] sm:$0xff]
        %v407 = vld [vmem:[%s3 + $0x118] sm:$0xff]
        %v408 = vld [vmem:[%s3 + $0x120] sm:$0xff]
        %v409 = vld [vmem:[%s3 + $0x128] sm:$0xff]
        %v410 = vld [vmem:[%s3 + $0x130] sm:$0xff]
        %v411 = vld [vmem:[%s3 + $0x138] sm:$0xff]
        %v412 = vld [vmem:[%s3 + $0x140] sm:$0xff]
        %v413 = vld [vmem:[%s3 + $0x148] sm:$0xff]
        %v414 = vld [vmem:[%s3 + $0x150] sm:$0xff]
        %v415 = vld [vmem:[%s3 + $0x158] sm:$0xff]
        %v416 = vld [vmem:[%s3 + $0x160] sm:$0xff]
        %v417 = vld [vmem:[%s3 + $0x168] sm:$0xff]
        %v418 = vld [vmem:[%s3 + $0x170] sm:$0xff]
        %v419 = vld [vmem:[%s3 + $0x178] sm:$0xff]
        %v420 = vld [vmem:[%s3 + $0x180] sm:$0xff]
        %v421 = vld [vmem:[%s3 + $0x188] sm:$0xff]
        %v422 = vld [vmem:[%s3 + $0x190] sm:$0xff]
        %v423 = vld [vmem:[%s3 + $0x198] sm:$0xff]
        %v424 = vld [vmem:[%s3 + $0x1a0] sm:$0xff]
        %v425 = vld [vmem:[%s3 + $0x1a8] sm:$0xff]
        %v426 = vld [vmem:[%s3 + $0x1b0] sm:$0xff]
        %v427 = vld [vmem:[%s3 + $0x1b8] sm:$0xff]
        %v428 = vld [vmem:[%s3 + $0x1c0] sm:$0xff]
        %v429 = vld [vmem:[%s3 + $0x1c8] sm:$0xff]
        %v430 = vld [vmem:[%s3 + $0x1d0] sm:$0xff]
        %v431 = vld [vmem:[%s3 + $0x1d8] sm:$0xff]
        %v432 = vld [vmem:[%s3 + $0x1e0] sm:$0xff]
        %v433 = vld [vmem:[%s3 + $0x1e8] sm:$0xff]
        %v434 = vld [vmem:[%s3 + $0x1f0] sm:$0xff]
        %v435 = vld [vmem:[%s3 + $0x1f8] sm:$0xff]
        %v436 = vld [vmem:[%s4] sm:$0xf]
        %v438 = vlaneseq
        %v439 = vshrl.u32 %v438, 7
        %v440 = vsub.s32 0, %v439
        %v441 = vrot.slane %v436, %v440
        %v442 = vlaneseq
        %v443 = vshrl.u32 %v442, 7
        %v444 = vsub.s32 1, %v443
        %v445 = vrot.slane %v436, %v444
        %v446 = vlaneseq
        %v447 = vshrl.u32 %v446, 7
        %v448 = vsub.s32 2, %v447
        %v449 = vrot.slane %v436, %v448
        %v450 = vlaneseq
        %v451 = vshrl.u32 %v450, 7
        %v452 = vsub.s32 3, %v451
        %v453 = vrot.slane %v436, %v452
        %458 = vmatprep.subr.mxu0 %v373
        %459 = vmatpush1.msra.mxu0 %v372
        %460 = vmatprep.subr.mxu0 %v377
        %461 = vmatpush1.msra.mxu0 %v376
        %462 = vmatprep.subr.mxu0 %v381
        %463 = vmatpush1.msra.mxu0 %v380
        %464 = vmatprep.subr.mxu0 %v385
        %465 = vmatpush1.msra.mxu0 %v384
        %466 = vmatprep.subr.mxu0 %v389
        %467 = vmatpush1.msra.mxu0 %v388
        %468 = vmatprep.subr.mxu0 %v393
        %469 = vmatpush1.msra.mxu0 %v392
        %470 = vmatprep.subr.mxu0 %v397
        %471 = vmatpush1.msra.mxu0 %v396
        %472 = vmatprep.subr.mxu0 %v401
        %473 = vmatpush1.msra.mxu0 %v400
        %474 = vmatprep.subr.mxu0 %v405
        %475 = vmatpush1.msra.mxu0 %v404
        %476 = vmatprep.subr.mxu0 %v409
        %477 = vmatpush1.msra.mxu0 %v408
        %478 = vmatprep.subr.mxu0 %v413
        %479 = vmatpush1.msra.mxu0 %v412
        %480 = vmatprep.subr.mxu0 %v417
        %481 = vmatpush1.msra.mxu0 %v416
        %482 = vmatprep.subr.mxu0 %v421
        %483 = vmatpush1.msra.mxu0 %v420
        %484 = vmatprep.subr.mxu0 %v425
        %485 = vmatpush1.msra.mxu0 %v424
        %486 = vmatprep.subr.mxu0 %v429
        %487 = vmatpush1.msra.mxu0 %v428
        %488 = vmatprep.subr.mxu0 %v433
        %489 = vmatpush1.msra.mxu0 %v432
        %490 = vmatprep.subr.mxu0 0.0
        %491 = vmatpush1.msra.mxu0 0.0
        %492 = vmatprep.subr.mxu0 0.0
        %493 = vmatpush1.msra.mxu0 0.0
        %494 = vmatprep.subr.mxu0 0.0
        %495 = vmatpush1.msra.mxu0 0.0
        %496 = vmatprep.subr.mxu0 0.0
        %497 = vmatpush1.msra.mxu0 0.0
        %498 = vmatprep.subr.mxu0 0.0
        %499 = vmatpush1.msra.mxu0 0.0
        %500 = vmatprep.subr.mxu0 0.0
        %501 = vmatpush1.msra.mxu0 0.0
        %502 = vmatprep.subr.mxu0 0.0
        %503 = vmatpush1.msra.mxu0 0.0
        %504 = vmatprep.subr.mxu0 0.0
        %505 = vmatpush1.msra.mxu0 0.0
        %506 = vmatprep.subr.mxu0 0.0
        %507 = vmatpush1.msra.mxu0 0.0
        %508 = vmatprep.subr.mxu0 0.0
        %509 = vmatpush1.msra.mxu0 0.0
        %510 = vmatprep.subr.mxu0 0.0
        %511 = vmatpush1.msra.mxu0 0.0
        %512 = vmatprep.subr.mxu0 0.0
        %513 = vmatpush1.msra.mxu0 0.0
        %514 = vmatprep.subr.mxu0 0.0
        %515 = vmatpush1.msra.mxu0 0.0
        %516 = vmatprep.subr.mxu0 0.0
        %517 = vmatpush1.msra.mxu0 0.0
        %518 = vmatprep.subr.mxu0 0.0
        %519 = vmatpush1.msra.mxu0 0.0
        %520 = vmatprep.subr.mxu0 0.0
        %521 = vmatpush1.msra.mxu0 0.0
        %522 = vmatprep.mubr.f32.mxu0 0.0
        %523 = vmatmul.mubr.f32.gmra.mrb[0].mxu0 %v356
        %v524 = vpop.f32.mrb[0].mxu0
        %v525 = vadd.f32 %v441, %v524
        %v526 = vpop.f32.mrb[0].mxu0
        %v527 = vadd.f32 %v445, %v526
        %528 = vmatprep.mubr.f32.mxu0 0.0
        %529 = vmatmul.mubr.f32.gmra.mrb[0].mxu0 %v357
        %v530 = vpop.f32.mrb[0].mxu0
        %v531 = vadd.f32 %v441, %v530
        %v532 = vpop.f32.mrb[0].mxu0
        %v533 = vadd.f32 %v445, %v532
        %534 = vmatprep.mubr.f32.mxu0 0.0
        %535 = vmatmul.mubr.f32.gmra.mrb[0].mxu0 %v358
        %v536 = vpop.f32.mrb[0].mxu0
        %v537 = vadd.f32 %v441, %v536
        %v538 = vpop.f32.mrb[0].mxu0
        %v539 = vadd.f32 %v445, %v538
        %540 = vmatprep.mubr.f32.mxu0 0.0
        %541 = vmatmul.mubr.f32.gmra.mrb[0].mxu0 %v359
        %v542 = vpop.f32.mrb[0].mxu0
        %v543 = vadd.f32 %v441, %v542
        %v544 = vpop.f32.mrb[0].mxu0
        %v545 = vadd.f32 %v445, %v544
        %546 = vmatprep.mubr.f32.mxu0 0.0
        %547 = vmatmul.mubr.f32.gmra.mrb[0].mxu0 %v360
        %v548 = vpop.f32.mrb[0].mxu0
        %v549 = vadd.f32 %v441, %v548
        %v550 = vpop.f32.mrb[0].mxu0
        %v551 = vadd.f32 %v445, %v550
        %552 = vmatprep.mubr.f32.mxu0 0.0
        %553 = vmatmul.mubr.f32.gmra.mrb[0].mxu0 %v361
        %v554 = vpop.f32.mrb[0].mxu0
        %v555 = vadd.f32 %v441, %v554
        %v556 = vpop.f32.mrb[0].mxu0
        %v557 = vadd.f32 %v445, %v556
        %558 = vmatprep.mubr.f32.mxu0 0.0
        %559 = vmatmul.mubr.f32.gmra.mrb[0].mxu0 %v362
        %v560 = vpop.f32.mrb[0].mxu0
        %v561 = vadd.f32 %v441, %v560
        %v562 = vpop.f32.mrb[0].mxu0
        %v563 = vadd.f32 %v445, %v562
        %564 = vmatprep.mubr.f32.mxu0 0.0
        %565 = vmatmul.mubr.f32.gmra.mrb[0].mxu0 %v363
        %v566 = vpop.f32.mrb[0].mxu0
        %v567 = vadd.f32 %v441, %v566
        %v568 = vpop.f32.mrb[0].mxu0
        %v569 = vadd.f32 %v445, %v568
        %570 = vmatprep.mubr.f32.mxu0 0.0
        %571 = vmatmul.mubr.f32.gmra.mrb[0].mxu0 %v364
        %v572 = vpop.f32.mrb[0].mxu0
        %v573 = vadd.f32 %v441, %v572
        %v574 = vpop.f32.mrb[0].mxu0
        %v575 = vadd.f32 %v445, %v574
        %576 = vmatprep.mubr.f32.mxu0 0.0
        %577 = vmatmul.mubr.f32.gmra.mrb[0].mxu0 %v365
        %v578 = vpop.f32.mrb[0].mxu0
        %v579 = vadd.f32 %v441, %v578
        %v580 = vpop.f32.mrb[0].mxu0
        %v581 = vadd.f32 %v445, %v580
        %582 = vmatprep.mubr.f32.mxu0 0.0
        %583 = vmatmul.mubr.f32.gmra.mrb[0].mxu0 %v366
        %v584 = vpop.f32.mrb[0].mxu0
        %v585 = vadd.f32 %v441, %v584
        %v586 = vpop.f32.mrb[0].mxu0
        %v587 = vadd.f32 %v445, %v586
        %588 = vmatprep.mubr.f32.mxu0 0.0
        %589 = vmatmul.mubr.f32.gmra.mrb[0].mxu0 %v367
        %v590 = vpop.f32.mrb[0].mxu0
        %v591 = vadd.f32 %v441, %v590
        %v592 = vpop.f32.mrb[0].mxu0
        %v593 = vadd.f32 %v445, %v592
        %594 = vmatprep.mubr.f32.mxu0 0.0
        %595 = vmatmul.mubr.f32.gmra.mrb[0].mxu0 %v368
        %v596 = vpop.f32.mrb[0].mxu0
        %v597 = vadd.f32 %v441, %v596
        %v598 = vpop.f32.mrb[0].mxu0
        %v599 = vadd.f32 %v445, %v598
        %600 = vmatprep.mubr.f32.mxu0 0.0
        %601 = vmatmul.mubr.f32.gmra.mrb[0].mxu0 %v369
        %v602 = vpop.f32.mrb[0].mxu0
        %v603 = vadd.f32 %v441, %v602
        %v604 = vpop.f32.mrb[0].mxu0
        %v605 = vadd.f32 %v445, %v604
        %606 = vmatprep.mubr.f32.mxu0 0.0
        %607 = vmatmul.mubr.f32.gmra.mrb[0].mxu0 %v370
        %v608 = vpop.f32.mrb[0].mxu0
        %v609 = vadd.f32 %v441, %v608
        %v610 = vpop.f32.mrb[0].mxu0
        %v611 = vadd.f32 %v445, %v610
        %612 = vmatprep.mubr.f32.mxu0 0.0
        %613 = vmatmul.mubr.f32.gmra.mrb[0].mxu0 %v371
        %v614 = vpop.f32.mrb[0].mxu0
        %v615 = vadd.f32 %v441, %v614
        %v616 = vpop.f32.mrb[0].mxu0
        %v617 = vadd.f32 %v445, %v616
        %618 = vdwg.mxu0
        %619 = vmatprep.subr.mxu0 %v375
        %620 = vmatpush1.msra.mxu0 %v374
        %621 = vmatprep.subr.mxu0 %v379
        %622 = vmatpush1.msra.mxu0 %v378
        %623 = vmatprep.subr.mxu0 %v383
        %624 = vmatpush1.msra.mxu0 %v382
        %625 = vmatprep.subr.mxu0 %v387
        %626 = vmatpush1.msra.mxu0 %v386
        %627 = vmatprep.subr.mxu0 %v391
        %628 = vmatpush1.msra.mxu0 %v390
        %629 = vmatprep.subr.mxu0 %v395
        %630 = vmatpush1.msra.mxu0 %v394
        %631 = vmatprep.subr.mxu0 %v399
        %632 = vmatpush1.msra.mxu0 %v398
        %633 = vmatprep.subr.mxu0 %v403
        %634 = vmatpush1.msra.mxu0 %v402
        %635 = vmatprep.subr.mxu0 %v407
        %636 = vmatpush1.msra.mxu0 %v406
        %637 = vmatprep.subr.mxu0 %v411
        %638 = vmatpush1.msra.mxu0 %v410
        %639 = vmatprep.subr.mxu0 %v415
        %640 = vmatpush1.msra.mxu0 %v414
        %641 = vmatprep.subr.mxu0 %v419
        %642 = vmatpush1.msra.mxu0 %v418
        %643 = vmatprep.subr.mxu0 %v423
        %644 = vmatpush1.msra.mxu0 %v422
        %645 = vmatprep.subr.mxu0 %v427
        %646 = vmatpush1.msra.mxu0 %v426
        %647 = vmatprep.subr.mxu0 %v431
        %648 = vmatpush1.msra.mxu0 %v430
        %649 = vmatprep.subr.mxu0 %v435
        %650 = vmatpush1.msra.mxu0 %v434
        %651 = vmatprep.subr.mxu0 0.0
        %652 = vmatpush1.msra.mxu0 0.0
        %653 = vmatprep.subr.mxu0 0.0
        %654 = vmatpush1.msra.mxu0 0.0
        %655 = vmatprep.subr.mxu0 0.0
        %656 = vmatpush1.msra.mxu0 0.0
        %657 = vmatprep.subr.mxu0 0.0
        %658 = vmatpush1.msra.mxu0 0.0
        %659 = vmatprep.subr.mxu0 0.0
        %660 = vmatpush1.msra.mxu0 0.0
        %661 = vmatprep.subr.mxu0 0.0
        %662 = vmatpush1.msra.mxu0 0.0
        %663 = vmatprep.subr.mxu0 0.0
        %664 = vmatpush1.msra.mxu0 0.0
        %665 = vmatprep.subr.mxu0 0.0
        %666 = vmatpush1.msra.mxu0 0.0
        %667 = vmatprep.subr.mxu0 0.0
        %668 = vmatpush1.msra.mxu0 0.0
        %669 = vmatprep.subr.mxu0 0.0
        %670 = vmatpush1.msra.mxu0 0.0
        %671 = vmatprep.subr.mxu0 0.0
        %672 = vmatpush1.msra.mxu0 0.0
        %673 = vmatprep.subr.mxu0 0.0
        %674 = vmatpush1.msra.mxu0 0.0
        %675 = vmatprep.subr.mxu0 0.0
        %676 = vmatpush1.msra.mxu0 0.0
        %677 = vmatprep.subr.mxu0 0.0
        %678 = vmatpush1.msra.mxu0 0.0
        %679 = vmatprep.subr.mxu0 0.0
        %680 = vmatpush1.msra.mxu0 0.0
        %681 = vmatprep.subr.mxu0 0.0
        %682 = vmatpush1.msra.mxu0 0.0
        %683 = vmatprep.mubr.f32.mxu0 0.0
        %684 = vmatmul.mubr.f32.gmra.mrb[0].mxu0 %v356
        %v685 = vpop.f32.mrb[0].mxu0
        %v686 = vadd.f32 %v449, %v685
        %v687 = vpop.f32.mrb[0].mxu0
        %v688 = vadd.f32 %v453, %v687
        %689 = vmatprep.mubr.f32.mxu0 0.0
        %690 = vmatmul.mubr.f32.gmra.mrb[0].mxu0 %v357
        %v691 = vpop.f32.mrb[0].mxu0
        %v692 = vadd.f32 %v449, %v691
        %v693 = vpop.f32.mrb[0].mxu0
        %v694 = vadd.f32 %v453, %v693
        %695 = vmatprep.mubr.f32.mxu0 0.0
        %696 = vmatmul.mubr.f32.gmra.mrb[0].mxu0 %v358
        %v697 = vpop.f32.mrb[0].mxu0
        %v698 = vadd.f32 %v449, %v697
        %v699 = vpop.f32.mrb[0].mxu0
        %v700 = vadd.f32 %v453, %v699
        %701 = vmatprep.mubr.f32.mxu0 0.0
        %702 = vmatmul.mubr.f32.gmra.mrb[0].mxu0 %v359
        %v703 = vpop.f32.mrb[0].mxu0
        %v704 = vadd.f32 %v449, %v703
        %v705 = vpop.f32.mrb[0].mxu0
        %v706 = vadd.f32 %v453, %v705
        %707 = vmatprep.mubr.f32.mxu0 0.0
        %708 = vmatmul.mubr.f32.gmra.mrb[0].mxu0 %v360
        %v709 = vpop.f32.mrb[0].mxu0
        %v710 = vadd.f32 %v449, %v709
        %v711 = vpop.f32.mrb[0].mxu0
        %v712 = vadd.f32 %v453, %v711
        %713 = vmatprep.mubr.f32.mxu0 0.0
        %714 = vmatmul.mubr.f32.gmra.mrb[0].mxu0 %v361
        %v715 = vpop.f32.mrb[0].mxu0
        %v716 = vadd.f32 %v449, %v715
        %v717 = vpop.f32.mrb[0].mxu0
        %v718 = vadd.f32 %v453, %v717
        %719 = vmatprep.mubr.f32.mxu0 0.0
        %720 = vmatmul.mubr.f32.gmra.mrb[0].mxu0 %v362
        %v721 = vpop.f32.mrb[0].mxu0
        %v722 = vadd.f32 %v449, %v721
        %v723 = vpop.f32.mrb[0].mxu0
        %v724 = vadd.f32 %v453, %v723
        %725 = vmatprep.mubr.f32.mxu0 0.0
        %726 = vmatmul.mubr.f32.gmra.mrb[0].mxu0 %v363
        %v727 = vpop.f32.mrb[0].mxu0
        %v728 = vadd.f32 %v449, %v727
        %v729 = vpop.f32.mrb[0].mxu0
        %v730 = vadd.f32 %v453, %v729
        %731 = vmatprep.mubr.f32.mxu0 0.0
        %732 = vmatmul.mubr.f32.gmra.mrb[0].mxu0 %v364
        %v733 = vpop.f32.mrb[0].mxu0
        %v734 = vadd.f32 %v449, %v733
        %v735 = vpop.f32.mrb[0].mxu0
        %v736 = vadd.f32 %v453, %v735
        %737 = vmatprep.mubr.f32.mxu0 0.0
        %738 = vmatmul.mubr.f32.gmra.mrb[0].mxu0 %v365
        %v739 = vpop.f32.mrb[0].mxu0
        %v740 = vadd.f32 %v449, %v739
        %v741 = vpop.f32.mrb[0].mxu0
        %v742 = vadd.f32 %v453, %v741
        %743 = vmatprep.mubr.f32.mxu0 0.0
        %744 = vmatmul.mubr.f32.gmra.mrb[0].mxu0 %v366
        %v745 = vpop.f32.mrb[0].mxu0
        %v746 = vadd.f32 %v449, %v745
        %v747 = vpop.f32.mrb[0].mxu0
        %v748 = vadd.f32 %v453, %v747
        %749 = vmatprep.mubr.f32.mxu0 0.0
        %750 = vmatmul.mubr.f32.gmra.mrb[0].mxu0 %v367
        %v751 = vpop.f32.mrb[0].mxu0
        %v752 = vadd.f32 %v449, %v751
        %v753 = vpop.f32.mrb[0].mxu0
        %v754 = vadd.f32 %v453, %v753
        %755 = vmatprep.mubr.f32.mxu0 0.0
        %756 = vmatmul.mubr.f32.gmra.mrb[0].mxu0 %v368
        %v757 = vpop.f32.mrb[0].mxu0
        %v758 = vadd.f32 %v449, %v757
        %v759 = vpop.f32.mrb[0].mxu0
        %v760 = vadd.f32 %v453, %v759
        %761 = vmatprep.mubr.f32.mxu0 0.0
        %762 = vmatmul.mubr.f32.gmra.mrb[0].mxu0 %v369
        %v763 = vpop.f32.mrb[0].mxu0
        %v764 = vadd.f32 %v449, %v763
        %v765 = vpop.f32.mrb[0].mxu0
        %v766 = vadd.f32 %v453, %v765
        %767 = vmatprep.mubr.f32.mxu0 0.0
        %768 = vmatmul.mubr.f32.gmra.mrb[0].mxu0 %v370
        %v769 = vpop.f32.mrb[0].mxu0
        %v770 = vadd.f32 %v449, %v769
        %v771 = vpop.f32.mrb[0].mxu0
        %v772 = vadd.f32 %v453, %v771
        %773 = vmatprep.mubr.f32.mxu0 0.0
        %774 = vmatmul.mubr.f32.gmra.mrb[0].mxu0 %v371
        %v775 = vpop.f32.mrb[0].mxu0
        %v776 = vadd.f32 %v449, %v775
        %v777 = vpop.f32.mrb[0].mxu0
        %v778 = vadd.f32 %v453, %v777
        %779 = vdwg.mxu0
        %v780 = vxor.u32 %v525, 2147483648
        %v781 = vxor.u32 %v531, 2147483648
        %v782 = vxor.u32 %v537, 2147483648
        %v783 = vxor.u32 %v543, 2147483648
        %v784 = vxor.u32 %v549, 2147483648
        %v785 = vxor.u32 %v555, 2147483648
        %v786 = vxor.u32 %v561, 2147483648
        %v787 = vxor.u32 %v567, 2147483648
        %v788 = vxor.u32 %v573, 2147483648
        %v789 = vxor.u32 %v579, 2147483648
        %v790 = vxor.u32 %v585, 2147483648
        %v791 = vxor.u32 %v591, 2147483648
        %v792 = vxor.u32 %v597, 2147483648
        %v793 = vxor.u32 %v603, 2147483648
        %v794 = vxor.u32 %v609, 2147483648
        %v795 = vxor.u32 %v615, 2147483648
        %v796 = vmul.f32 %v780, 1.442695
        %v797 = vpow.pop %v796
        %v798 = vmul.f32 %v781, 1.442695
        %v799 = vpow.pop %v798
        %v800 = vmul.f32 %v782, 1.442695
        %v801 = vpow.pop %v800
        %v802 = vmul.f32 %v783, 1.442695
        %v803 = vpow.pop %v802
        %v804 = vmul.f32 %v784, 1.442695
        %v805 = vpow.pop %v804
        %v806 = vmul.f32 %v785, 1.442695
        %v807 = vpow.pop %v806
        %v808 = vmul.f32 %v786, 1.442695
        %v809 = vpow.pop %v808
        %v810 = vmul.f32 %v787, 1.442695
        %v811 = vpow.pop %v810
        %v812 = vmul.f32 %v788, 1.442695
        %v813 = vpow.pop %v812
        %v814 = vmul.f32 %v789, 1.442695
        %v815 = vpow.pop %v814
        %v816 = vmul.f32 %v790, 1.442695
        %v817 = vpow.pop %v816
        %v818 = vmul.f32 %v791, 1.442695
        %v819 = vpow.pop %v818
        %v820 = vmul.f32 %v792, 1.442695
        %v821 = vpow.pop %v820
        %v822 = vmul.f32 %v793, 1.442695
        %v823 = vpow.pop %v822
        %v824 = vmul.f32 %v794, 1.442695
        %v825 = vpow.pop %v824
        %v826 = vmul.f32 %v795, 1.442695
        %v827 = vpow.pop %v826
        %v828 = vadd.f32 %v797, 1.0
        %v829 = vadd.f32 %v799, 1.0
        %v830 = vadd.f32 %v801, 1.0
        %v831 = vadd.f32 %v803, 1.0
        %v832 = vadd.f32 %v805, 1.0
        %v833 = vadd.f32 %v807, 1.0
        %v834 = vadd.f32 %v809, 1.0
        %v835 = vadd.f32 %v811, 1.0
        %v836 = vadd.f32 %v813, 1.0
        %v837 = vadd.f32 %v815, 1.0
        %v838 = vadd.f32 %v817, 1.0
        %v839 = vadd.f32 %v819, 1.0
        %v840 = vadd.f32 %v821, 1.0
        %v841 = vadd.f32 %v823, 1.0
        %v842 = vadd.f32 %v825, 1.0
        %v843 = vadd.f32 %v827, 1.0
        %v844 = vrcp.pop %v828
        %v845 = vmul.f32 1.0, %v844
        %v846 = vrcp.pop %v829
        %v847 = vmul.f32 1.0, %v846
        %v848 = vrcp.pop %v830
        %v849 = vmul.f32 1.0, %v848
        %v850 = vrcp.pop %v831
        %v851 = vmul.f32 1.0, %v850
        %v852 = vrcp.pop %v832
        %v853 = vmul.f32 1.0, %v852
        %v854 = vrcp.pop %v833
        %v855 = vmul.f32 1.0, %v854
        %v856 = vrcp.pop %v834
        %v857 = vmul.f32 1.0, %v856
        %v858 = vrcp.pop %v835
        %v859 = vmul.f32 1.0, %v858
        %v860 = vrcp.pop %v836
        %v861 = vmul.f32 1.0, %v860
        %v862 = vrcp.pop %v837
        %v863 = vmul.f32 1.0, %v862
        %v864 = vrcp.pop %v838
        %v865 = vmul.f32 1.0, %v864
        %v866 = vrcp.pop %v839
        %v867 = vmul.f32 1.0, %v866
        %v868 = vrcp.pop %v840
        %v869 = vmul.f32 1.0, %v868
        %v870 = vrcp.pop %v841
        %v871 = vmul.f32 1.0, %v870
        %v872 = vrcp.pop %v842
        %v873 = vmul.f32 1.0, %v872
        %v874 = vrcp.pop %v843
        %v875 = vmul.f32 1.0, %v874
        %v876 = vxor.u32 %v527, 2147483648
        %v877 = vxor.u32 %v533, 2147483648
        %v878 = vxor.u32 %v539, 2147483648
        %v879 = vxor.u32 %v545, 2147483648
        %v880 = vxor.u32 %v551, 2147483648
        %v881 = vxor.u32 %v557, 2147483648
        %v882 = vxor.u32 %v563, 2147483648
        %v883 = vxor.u32 %v569, 2147483648
        %v884 = vxor.u32 %v575, 2147483648
        %v885 = vxor.u32 %v581, 2147483648
        %v886 = vxor.u32 %v587, 2147483648
        %v887 = vxor.u32 %v593, 2147483648
        %v888 = vxor.u32 %v599, 2147483648
        %v889 = vxor.u32 %v605, 2147483648
        %v890 = vxor.u32 %v611, 2147483648
        %v891 = vxor.u32 %v617, 2147483648
        %v892 = vmul.f32 %v876, 1.442695
        %v893 = vpow.pop %v892
        %v894 = vmul.f32 %v877, 1.442695
        %v895 = vpow.pop %v894
        %v896 = vmul.f32 %v878, 1.442695
        %v897 = vpow.pop %v896
        %v898 = vmul.f32 %v879, 1.442695
        %v899 = vpow.pop %v898
        %v900 = vmul.f32 %v880, 1.442695
        %v901 = vpow.pop %v900
        %v902 = vmul.f32 %v881, 1.442695
        %v903 = vpow.pop %v902
        %v904 = vmul.f32 %v882, 1.442695
        %v905 = vpow.pop %v904
        %v906 = vmul.f32 %v883, 1.442695
        %v907 = vpow.pop %v906
        %v908 = vmul.f32 %v884, 1.442695
        %v909 = vpow.pop %v908
        %v910 = vmul.f32 %v885, 1.442695
        %v911 = vpow.pop %v910
        %v912 = vmul.f32 %v886, 1.442695
        %v913 = vpow.pop %v912
        %v914 = vmul.f32 %v887, 1.442695
        %v915 = vpow.pop %v914
        %v916 = vmul.f32 %v888, 1.442695
        %v917 = vpow.pop %v916
        %v918 = vmul.f32 %v889, 1.442695
        %v919 = vpow.pop %v918
        %v920 = vmul.f32 %v890, 1.442695
        %v921 = vpow.pop %v920
        %v922 = vmul.f32 %v891, 1.442695
        %v923 = vpow.pop %v922
        %v924 = vadd.f32 %v893, 1.0
        %v925 = vadd.f32 %v895, 1.0
        %v926 = vadd.f32 %v897, 1.0
        %v927 = vadd.f32 %v899, 1.0
        %v928 = vadd.f32 %v901, 1.0
        %v929 = vadd.f32 %v903, 1.0
        %v930 = vadd.f32 %v905, 1.0
        %v931 = vadd.f32 %v907, 1.0
        %v932 = vadd.f32 %v909, 1.0
        %v933 = vadd.f32 %v911, 1.0
        %v934 = vadd.f32 %v913, 1.0
        %v935 = vadd.f32 %v915, 1.0
        %v936 = vadd.f32 %v917, 1.0
        %v937 = vadd.f32 %v919, 1.0
        %v938 = vadd.f32 %v921, 1.0
        %v939 = vadd.f32 %v923, 1.0
        %v940 = vrcp.pop %v924
        %v941 = vmul.f32 1.0, %v940
        %v942 = vrcp.pop %v925
        %v943 = vmul.f32 1.0, %v942
        %v944 = vrcp.pop %v926
        %v945 = vmul.f32 1.0, %v944
        %v946 = vrcp.pop %v927
        %v947 = vmul.f32 1.0, %v946
        %v948 = vrcp.pop %v928
        %v949 = vmul.f32 1.0, %v948
        %v950 = vrcp.pop %v929
        %v951 = vmul.f32 1.0, %v950
        %v952 = vrcp.pop %v930
        %v953 = vmul.f32 1.0, %v952
        %v954 = vrcp.pop %v931
        %v955 = vmul.f32 1.0, %v954
        %v956 = vrcp.pop %v932
        %v957 = vmul.f32 1.0, %v956
        %v958 = vrcp.pop %v933
        %v959 = vmul.f32 1.0, %v958
        %v960 = vrcp.pop %v934
        %v961 = vmul.f32 1.0, %v960
        %v962 = vrcp.pop %v935
        %v963 = vmul.f32 1.0, %v962
        %v964 = vrcp.pop %v936
        %v965 = vmul.f32 1.0, %v964
        %v966 = vrcp.pop %v937
        %v967 = vmul.f32 1.0, %v966
        %v968 = vrcp.pop %v938
        %v969 = vmul.f32 1.0, %v968
        %v970 = vrcp.pop %v939
        %v971 = vmul.f32 1.0, %v970
        %v972 = vmul.f32 %v845, %v688
        %v973 = vmul.f32 %v847, %v694
        %v974 = vmul.f32 %v849, %v700
        %v975 = vmul.f32 %v851, %v706
        %v976 = vmul.f32 %v853, %v712
        %v977 = vmul.f32 %v855, %v718
        %v978 = vmul.f32 %v857, %v724
        %v979 = vmul.f32 %v859, %v730
        %v980 = vmul.f32 %v861, %v736
        %v981 = vmul.f32 %v863, %v742
        %v982 = vmul.f32 %v865, %v748
        %v983 = vmul.f32 %v867, %v754
        %v984 = vmul.f32 %v869, %v760
        %v985 = vmul.f32 %v871, %v766
        %v986 = vmul.f32 %v873, %v772
        %v987 = vmul.f32 %v875, %v778
        %v988 = vadd.f32 %v686, %v972
        %v989 = vadd.f32 %v692, %v973
        %v990 = vadd.f32 %v698, %v974
        %v991 = vadd.f32 %v704, %v975
        %v992 = vadd.f32 %v710, %v976
        %v993 = vadd.f32 %v716, %v977
        %v994 = vadd.f32 %v722, %v978
        %v995 = vadd.f32 %v728, %v979
        %v996 = vadd.f32 %v734, %v980
        %v997 = vadd.f32 %v740, %v981
        %v998 = vadd.f32 %v746, %v982
        %v999 = vadd.f32 %v752, %v983
        %v1000 = vadd.f32 %v758, %v984
        %v1001 = vadd.f32 %v764, %v985
        %v1002 = vadd.f32 %v770, %v986
        %v1003 = vadd.f32 %v776, %v987
        %v1004 = vtanh.pop %v988
        %v1005 = vtanh.pop %v989
        %v1006 = vtanh.pop %v990
        %v1007 = vtanh.pop %v991
        %v1008 = vtanh.pop %v992
        %v1009 = vtanh.pop %v993
        %v1010 = vtanh.pop %v994
        %v1011 = vtanh.pop %v995
        %v1012 = vtanh.pop %v996
        %v1013 = vtanh.pop %v997
        %v1014 = vtanh.pop %v998
        %v1015 = vtanh.pop %v999
        %v1016 = vtanh.pop %v1000
        %v1017 = vtanh.pop %v1001
        %v1018 = vtanh.pop %v1002
        %v1019 = vtanh.pop %v1003
        %v1020 = vsub.f32 1.0, %v941
        %v1021 = vsub.f32 1.0, %v943
        %v1022 = vsub.f32 1.0, %v945
        %v1023 = vsub.f32 1.0, %v947
        %v1024 = vsub.f32 1.0, %v949
        %v1025 = vsub.f32 1.0, %v951
        %v1026 = vsub.f32 1.0, %v953
        %v1027 = vsub.f32 1.0, %v955
        %v1028 = vsub.f32 1.0, %v957
        %v1029 = vsub.f32 1.0, %v959
        %v1030 = vsub.f32 1.0, %v961
        %v1031 = vsub.f32 1.0, %v963
        %v1032 = vsub.f32 1.0, %v965
        %v1033 = vsub.f32 1.0, %v967
        %v1034 = vsub.f32 1.0, %v969
        %v1035 = vsub.f32 1.0, %v971
        %v1036 = vmul.f32 %v1020, %v1004
        %v1037 = vmul.f32 %v1021, %v1005
        %v1038 = vmul.f32 %v1022, %v1006
        %v1039 = vmul.f32 %v1023, %v1007
        %v1040 = vmul.f32 %v1024, %v1008
        %v1041 = vmul.f32 %v1025, %v1009
        %v1042 = vmul.f32 %v1026, %v1010
        %v1043 = vmul.f32 %v1027, %v1011
        %v1044 = vmul.f32 %v1028, %v1012
        %v1045 = vmul.f32 %v1029, %v1013
        %v1046 = vmul.f32 %v1030, %v1014
        %v1047 = vmul.f32 %v1031, %v1015
        %v1048 = vmul.f32 %v1032, %v1016
        %v1049 = vmul.f32 %v1033, %v1017
        %v1050 = vmul.f32 %v1034, %v1018
        %v1051 = vmul.f32 %v1035, %v1019
        %v1052 = vmul.f32 %v941, %v356
        %v1053 = vmul.f32 %v943, %v357
        %v1054 = vmul.f32 %v945, %v358
        %v1055 = vmul.f32 %v947, %v359
        %v1056 = vmul.f32 %v949, %v360
        %v1057 = vmul.f32 %v951, %v361
        %v1058 = vmul.f32 %v953, %v362
        %v1059 = vmul.f32 %v955, %v363
        %v1060 = vmul.f32 %v957, %v364
        %v1061 = vmul.f32 %v959, %v365
        %v1062 = vmul.f32 %v961, %v366
        %v1063 = vmul.f32 %v963, %v367
        %v1064 = vmul.f32 %v965, %v368
        %v1065 = vmul.f32 %v967, %v369
        %v1066 = vmul.f32 %v969, %v370
        %v1067 = vmul.f32 %v971, %v371
        %v1068 = vadd.f32 %v1036, %v1052
        %v1069 = vadd.f32 %v1037, %v1053
        %v1070 = vadd.f32 %v1038, %v1054
        %v1071 = vadd.f32 %v1039, %v1055
        %v1072 = vadd.f32 %v1040, %v1056
        %v1073 = vadd.f32 %v1041, %v1057
        %v1074 = vadd.f32 %v1042, %v1058
        %v1075 = vadd.f32 %v1043, %v1059
        %v1076 = vadd.f32 %v1044, %v1060
        %v1077 = vadd.f32 %v1045, %v1061
        %v1078 = vadd.f32 %v1046, %v1062
        %v1079 = vadd.f32 %v1047, %v1063
        %v1080 = vadd.f32 %v1048, %v1064
        %v1081 = vadd.f32 %v1049, %v1065
        %v1082 = vadd.f32 %v1050, %v1066
        %v1083 = vadd.f32 %v1051, %v1067
        %1084 = vst [vmem:[#allocation2] sm:$0xff] %v1068
        %1085 = vst [vmem:[#allocation2 + $0x8] sm:$0xff] %v1069
        %1086 = vst [vmem:[#allocation2 + $0x10] sm:$0xff] %v1070
        %1087 = vst [vmem:[#allocation2 + $0x18] sm:$0xff] %v1071
        %1088 = vst [vmem:[#allocation2 + $0x20] sm:$0xff] %v1072
        %1089 = vst [vmem:[#allocation2 + $0x28] sm:$0xff] %v1073
        %1090 = vst [vmem:[#allocation2 + $0x30] sm:$0xff] %v1074
        %1091 = vst [vmem:[#allocation2 + $0x38] sm:$0xff] %v1075
        %1092 = vst [vmem:[#allocation2 + $0x40] sm:$0xff] %v1076
        %1093 = vst [vmem:[#allocation2 + $0x48] sm:$0xff] %v1077
        %1094 = vst [vmem:[#allocation2 + $0x50] sm:$0xff] %v1078
        %1095 = vst [vmem:[#allocation2 + $0x58] sm:$0xff] %v1079
        %1096 = vst [vmem:[#allocation2 + $0x60] sm:$0xff] %v1080
        %1097 = vst [vmem:[#allocation2 + $0x68] sm:$0xff] %v1081
        %1098 = vst [vmem:[#allocation2 + $0x70] sm:$0xff] %v1082
        %1099 = vst [vmem:[#allocation2 + $0x78] sm:$0xff] %v1083
        %1100 = vst [vmem:[%s6] sm:$0xff] %v1068
        %1101 = vst [vmem:[%s6 + $0x8] sm:$0xff] %v1069
        %1102 = vst [vmem:[%s6 + $0x10] sm:$0xff] %v1070
        %1103 = vst [vmem:[%s6 + $0x18] sm:$0xff] %v1071
        %1104 = vst [vmem:[%s6 + $0x20] sm:$0xff] %v1072
        %1105 = vst [vmem:[%s6 + $0x28] sm:$0xff] %v1073
        %1106 = vst [vmem:[%s6 + $0x30] sm:$0xff] %v1074
        %1107 = vst [vmem:[%s6 + $0x38] sm:$0xff] %v1075
        %1108 = vst [vmem:[%s6 + $0x40] sm:$0xff] %v1076
        %1109 = vst [vmem:[%s6 + $0x48] sm:$0xff] %v1077
        %1110 = vst [vmem:[%s6 + $0x50] sm:$0xff] %v1078
        %1111 = vst [vmem:[%s6 + $0x58] sm:$0xff] %v1079
        %1112 = vst [vmem:[%s6 + $0x60] sm:$0xff] %v1080
        %1113 = vst [vmem:[%s6 + $0x68] sm:$0xff] %v1081
        %1114 = vst [vmem:[%s6 + $0x70] sm:$0xff] %v1082
        %1115 = vst [vmem:[%s6 + $0x78] sm:$0xff] %v1083
        %v1116 = vld [vmem:[%s302] sm:$0xff]
        %v1117 = vld [vmem:[%s302 + $0x8] sm:$0xff]
        %v1118 = vld [vmem:[%s302 + $0x10] sm:$0xff]
        %v1119 = vld [vmem:[%s302 + $0x18] sm:$0xff]
        %v1120 = vld [vmem:[%s302 + $0x20] sm:$0xff]
        %v1121 = vld [vmem:[%s302 + $0x28] sm:$0xff]
        %v1122 = vld [vmem:[%s302 + $0x30] sm:$0xff]
        %v1123 = vld [vmem:[%s302 + $0x38] sm:$0xff]
        %v1124 = vld [vmem:[%s302 + $0x40] sm:$0xff]
        %v1125 = vld [vmem:[%s302 + $0x48] sm:$0xff]
        %v1126 = vld [vmem:[%s302 + $0x50] sm:$0xff]
        %v1127 = vld [vmem:[%s302 + $0x58] sm:$0xff]
        %v1128 = vld [vmem:[%s302 + $0x60] sm:$0xff]
        %v1129 = vld [vmem:[%s302 + $0x68] sm:$0xff]
        %v1130 = vld [vmem:[%s302 + $0x70] sm:$0xff]
        %v1131 = vld [vmem:[%s302 + $0x78] sm:$0xff]
        %1132 = vmatprep.subr.mxu0 0.0
        %1133 = vmatpush1.msra.mxu0 %v1068
        %1134 = vmatprep.subr.mxu0 0.0
        %1135 = vmatpush1.msra.mxu0 %v1069
        %1136 = vmatprep.subr.mxu0 0.0
        %1137 = vmatpush1.msra.mxu0 %v1070
        %1138 = vmatprep.subr.mxu0 0.0
        %1139 = vmatpush1.msra.mxu0 %v1071
        %1140 = vmatprep.subr.mxu0 0.0
        %1141 = vmatpush1.msra.mxu0 %v1072
        %1142 = vmatprep.subr.mxu0 0.0
        %1143 = vmatpush1.msra.mxu0 %v1073
        %1144 = vmatprep.subr.mxu0 0.0
        %1145 = vmatpush1.msra.mxu0 %v1074
        %1146 = vmatprep.subr.mxu0 0.0
        %1147 = vmatpush1.msra.mxu0 %v1075
        %1148 = vmatprep.subr.mxu0 0.0
        %1149 = vmatpush1.msra.mxu0 %v1076
        %1150 = vmatprep.subr.mxu0 0.0
        %1151 = vmatpush1.msra.mxu0 %v1077
        %1152 = vmatprep.subr.mxu0 0.0
        %1153 = vmatpush1.msra.mxu0 %v1078
        %1154 = vmatprep.subr.mxu0 0.0
        %1155 = vmatpush1.msra.mxu0 %v1079
        %1156 = vmatprep.subr.mxu0 0.0
        %1157 = vmatpush1.msra.mxu0 %v1080
        %1158 = vmatprep.subr.mxu0 0.0
        %1159 = vmatpush1.msra.mxu0 %v1081
        %1160 = vmatprep.subr.mxu0 0.0
        %1161 = vmatpush1.msra.mxu0 %v1082
        %1162 = vmatprep.subr.mxu0 0.0
        %1163 = vmatpush1.msra.mxu0 %v1083
        %1164 = vmatprep.subr.mxu0 0.0
        %1165 = vmatpush1.msra.mxu0 0.0
        %1166 = vmatprep.subr.mxu0 0.0
        %1167 = vmatpush1.msra.mxu0 0.0
        %1168 = vmatprep.subr.mxu0 0.0
        %1169 = vmatpush1.msra.mxu0 0.0
        %1170 = vmatprep.subr.mxu0 0.0
        %1171 = vmatpush1.msra.mxu0 0.0
        %1172 = vmatprep.subr.mxu0 0.0
        %1173 = vmatpush1.msra.mxu0 0.0
        %1174 = vmatprep.subr.mxu0 0.0
        %1175 = vmatpush1.msra.mxu0 0.0
        %1176 = vmatprep.subr.mxu0 0.0
        %1177 = vmatpush1.msra.mxu0 0.0
        %1178 = vmatprep.subr.mxu0 0.0
        %1179 = vmatpush1.msra.mxu0 0.0
        %1180 = vmatprep.subr.mxu0 0.0
        %1181 = vmatpush1.msra.mxu0 0.0
        %1182 = vmatprep.subr.mxu0 0.0
        %1183 = vmatpush1.msra.mxu0 0.0
        %1184 = vmatprep.subr.mxu0 0.0
        %1185 = vmatpush1.msra.mxu0 0.0
        %1186 = vmatprep.subr.mxu0 0.0
        %1187 = vmatpush1.msra.mxu0 0.0
        %1188 = vmatprep.subr.mxu0 0.0
        %1189 = vmatpush1.msra.mxu0 0.0
        %1190 = vmatprep.subr.mxu0 0.0
        %1191 = vmatpush1.msra.mxu0 0.0
        %1192 = vmatprep.subr.mxu0 0.0
        %1193 = vmatpush1.msra.mxu0 0.0
        %1194 = vmatprep.subr.mxu0 0.0
        %1195 = vmatpush1.msra.mxu0 0.0
        %1196 = vmatprep.mubr.f32.mxu0 0.0
        %1197 = vmatmul.mubr.f32.gmra.mrb[0].mxu0 %v1116
        %v1198 = vpop.f32.mrb[0].mxu0
        %v1199 = vadd.f32 0.0, %v1198
        %v1200 = vpop.f32.mrb[0].mxu0
        %1201 = vmatprep.mubr.f32.mxu0 0.0
        %1202 = vmatmul.mubr.f32.gmra.mrb[0].mxu0 %v1117
        %v1203 = vpop.f32.mrb[0].mxu0
        %v1204 = vadd.f32 0.0, %v1203
        %v1205 = vpop.f32.mrb[0].mxu0
        %1206 = vmatprep.mubr.f32.mxu0 0.0
        %1207 = vmatmul.mubr.f32.gmra.mrb[0].mxu0 %v1118
        %v1208 = vpop.f32.mrb[0].mxu0
        %v1209 = vadd.f32 0.0, %v1208
        %v1210 = vpop.f32.mrb[0].mxu0
        %1211 = vmatprep.mubr.f32.mxu0 0.0
        %1212 = vmatmul.mubr.f32.gmra.mrb[0].mxu0 %v1119
        %v1213 = vpop.f32.mrb[0].mxu0
        %v1214 = vadd.f32 0.0, %v1213
        %v1215 = vpop.f32.mrb[0].mxu0
        %1216 = vmatprep.mubr.f32.mxu0 0.0
        %1217 = vmatmul.mubr.f32.gmra.mrb[0].mxu0 %v1120
        %v1218 = vpop.f32.mrb[0].mxu0
        %v1219 = vadd.f32 0.0, %v1218
        %v1220 = vpop.f32.mrb[0].mxu0
        %1221 = vmatprep.mubr.f32.mxu0 0.0
        %1222 = vmatmul.mubr.f32.gmra.mrb[0].mxu0 %v1121
        %v1223 = vpop.f32.mrb[0].mxu0
        %v1224 = vadd.f32 0.0, %v1223
        %v1225 = vpop.f32.mrb[0].mxu0
        %1226 = vmatprep.mubr.f32.mxu0 0.0
        %1227 = vmatmul.mubr.f32.gmra.mrb[0].mxu0 %v1122
        %v1228 = vpop.f32.mrb[0].mxu0
        %v1229 = vadd.f32 0.0, %v1228
        %v1230 = vpop.f32.mrb[0].mxu0
        %1231 = vmatprep.mubr.f32.mxu0 0.0
        %1232 = vmatmul.mubr.f32.gmra.mrb[0].mxu0 %v1123
        %v1233 = vpop.f32.mrb[0].mxu0
        %v1234 = vadd.f32 0.0, %v1233
        %v1235 = vpop.f32.mrb[0].mxu0
        %1236 = vmatprep.mubr.f32.mxu0 0.0
        %1237 = vmatmul.mubr.f32.gmra.mrb[0].mxu0 %v1124
        %v1238 = vpop.f32.mrb[0].mxu0
        %v1239 = vadd.f32 0.0, %v1238
        %v1240 = vpop.f32.mrb[0].mxu0
        %1241 = vmatprep.mubr.f32.mxu0 0.0
        %1242 = vmatmul.mubr.f32.gmra.mrb[0].mxu0 %v1125
        %v1243 = vpop.f32.mrb[0].mxu0
        %v1244 = vadd.f32 0.0, %v1243
        %v1245 = vpop.f32.mrb[0].mxu0
        %1246 = vmatprep.mubr.f32.mxu0 0.0
        %1247 = vmatmul.mubr.f32.gmra.mrb[0].mxu0 %v1126
        %v1248 = vpop.f32.mrb[0].mxu0
        %v1249 = vadd.f32 0.0, %v1248
        %v1250 = vpop.f32.mrb[0].mxu0
        %1251 = vmatprep.mubr.f32.mxu0 0.0
        %1252 = vmatmul.mubr.f32.gmra.mrb[0].mxu0 %v1127
        %v1253 = vpop.f32.mrb[0].mxu0
        %v1254 = vadd.f32 0.0, %v1253
        %v1255 = vpop.f32.mrb[0].mxu0
        %1256 = vmatprep.mubr.f32.mxu0 0.0
        %1257 = vmatmul.mubr.f32.gmra.mrb[0].mxu0 %v1128
        %v1258 = vpop.f32.mrb[0].mxu0
        %v1259 = vadd.f32 0.0, %v1258
        %v1260 = vpop.f32.mrb[0].mxu0
        %1261 = vmatprep.mubr.f32.mxu0 0.0
        %1262 = vmatmul.mubr.f32.gmra.mrb[0].mxu0 %v1129
        %v1263 = vpop.f32.mrb[0].mxu0
        %v1264 = vadd.f32 0.0, %v1263
        %v1265 = vpop.f32.mrb[0].mxu0
        %1266 = vmatprep.mubr.f32.mxu0 0.0
        %1267 = vmatmul.mubr.f32.gmra.mrb[0].mxu0 %v1130
        %v1268 = vpop.f32.mrb[0].mxu0
        %v1269 = vadd.f32 0.0, %v1268
        %v1270 = vpop.f32.mrb[0].mxu0
        %1271 = vmatprep.mubr.f32.mxu0 0.0
        %1272 = vmatmul.mubr.f32.gmra.mrb[0].mxu0 %v1131
        %v1273 = vpop.f32.mrb[0].mxu0
        %v1274 = vadd.f32 0.0, %v1273
        %v1275 = vpop.f32.mrb[0].mxu0
        %1276 = vdwg.mxu0
        %v1277 = vpack.c.bf16 %v1204, %v1199
        %v1278 = vpack.c.bf16 %v1214, %v1209
        %v1279 = vpack.c.bf16 %v1224, %v1219
        %v1280 = vpack.c.bf16 %v1234, %v1229
        %v1281 = vpack.c.bf16 %v1244, %v1239
        %v1282 = vpack.c.bf16 %v1254, %v1249
        %v1283 = vpack.c.bf16 %v1264, %v1259
        %v1284 = vpack.c.bf16 %v1274, %v1269
        %1285 = vst [vmem:[#allocation3] sm:$0xff] %v1277
        %1286 = vst [vmem:[#allocation3 + $0x8] sm:$0xff] %v1278
        %1287 = vst [vmem:[#allocation3 + $0x10] sm:$0xff] %v1279
        %1288 = vst [vmem:[#allocation3 + $0x18] sm:$0xff] %v1280
        %1289 = vst [vmem:[#allocation3 + $0x20] sm:$0xff] %v1281
        %1290 = vst [vmem:[#allocation3 + $0x28] sm:$0xff] %v1282
        %1291 = vst [vmem:[#allocation3 + $0x30] sm:$0xff] %v1283
        %1292 = vst [vmem:[#allocation3 + $0x38] sm:$0xff] %v1284
      $region44: #{evolve_gcno_forward_sequence.1} parent=39 // pred_fallthru
        _
      // Predicated region
      $region49: #{evolve_gcno_forward_sequence.1} parent=39 // pred_check
        %p1293 = pneg %p315
      $region50: #{evolve_gcno_forward_sequence.1} parent=39 // pred_check_branch
        %1295 = sbr.rel (%p1293) target = $region52
      $region51: #{evolve_gcno_forward_sequence.1} parent=39 // pred_region
        %1296 = vst [vmem:[#allocation4] sm:$0xff] 0.0
        %1297 = vst [vmem:[#allocation4 + $0x8] sm:$0xff] 0.0
        %1298 = vst [vmem:[#allocation4 + $0x10] sm:$0xff] 0.0
        %1299 = vst [vmem:[#allocation4 + $0x18] sm:$0xff] 0.0
        %1300 = vst [vmem:[#allocation4 + $0x20] sm:$0xff] 0.0
        %1301 = vst [vmem:[#allocation4 + $0x28] sm:$0xff] 0.0
        %1302 = vst [vmem:[#allocation4 + $0x30] sm:$0xff] 0.0
        %1303 = vst [vmem:[#allocation4 + $0x38] sm:$0xff] 0.0
        %1304 = vst [vmem:[#allocation4 + $0x40] sm:$0xff] 0.0
        %1305 = vst [vmem:[#allocation4 + $0x48] sm:$0xff] 0.0
        %1306 = vst [vmem:[#allocation4 + $0x50] sm:$0xff] 0.0
        %1307 = vst [vmem:[#allocation4 + $0x58] sm:$0xff] 0.0
        %1308 = vst [vmem:[#allocation4 + $0x60] sm:$0xff] 0.0
        %1309 = vst [vmem:[#allocation4 + $0x68] sm:$0xff] 0.0
        %1310 = vst [vmem:[#allocation4 + $0x70] sm:$0xff] 0.0
        %1311 = vst [vmem:[#allocation4 + $0x78] sm:$0xff] 0.0
      $region52: #{evolve_gcno_forward_sequence.1} parent=39 // pred_fallthru
        _
      %s1312 = smul.u32 %s25, 128
      %v1313 = vld [vmem:[#allocation4] sm:$0xff]
      %v1314 = vld [vmem:[#allocation4 + $0x8] sm:$0xff]
      %v1315 = vld [vmem:[#allocation4 + $0x10] sm:$0xff]
      %v1316 = vld [vmem:[#allocation4 + $0x18] sm:$0xff]
      %v1317 = vld [vmem:[#allocation4 + $0x20] sm:$0xff]
      %v1318 = vld [vmem:[#allocation4 + $0x28] sm:$0xff]
      %v1319 = vld [vmem:[#allocation4 + $0x30] sm:$0xff]
      %v1320 = vld [vmem:[#allocation4 + $0x38] sm:$0xff]
      %v1321 = vld [vmem:[#allocation4 + $0x40] sm:$0xff]
      %v1322 = vld [vmem:[#allocation4 + $0x48] sm:$0xff]
      %v1323 = vld [vmem:[#allocation4 + $0x50] sm:$0xff]
      %v1324 = vld [vmem:[#allocation4 + $0x58] sm:$0xff]
      %v1325 = vld [vmem:[#allocation4 + $0x60] sm:$0xff]
      %v1326 = vld [vmem:[#allocation4 + $0x68] sm:$0xff]
      %v1327 = vld [vmem:[#allocation4 + $0x70] sm:$0xff]
      %v1328 = vld [vmem:[#allocation4 + $0x78] sm:$0xff]
      %v1329 = vld [vmem:[%s296] sm:$0xf]
      %v1330 = vld [vmem:[%s296 + $0x4] sm:$0xf]
      %v1331 = vld [vmem:[%s296 + $0x8] sm:$0xf]
      %v1332 = vld [vmem:[%s296 + $0xc] sm:$0xf]
      %v1333 = vld [vmem:[%s296 + $0x10] sm:$0xf]
      %v1334 = vld [vmem:[%s296 + $0x14] sm:$0xf]
      %v1335 = vld [vmem:[%s296 + $0x18] sm:$0xf]
      %v1336 = vld [vmem:[%s296 + $0x1c] sm:$0xf]
      %v1337 = vld [vmem:[%s296 + $0x20] sm:$0xf]
      %v1338 = vld [vmem:[%s296 + $0x24] sm:$0xf]
      %v1339 = vld [vmem:[%s296 + $0x28] sm:$0xf]
      %v1340 = vld [vmem:[%s296 + $0x2c] sm:$0xf]
      %v1341 = vld [vmem:[%s296 + $0x30] sm:$0xf]
      %v1342 = vld [vmem:[%s296 + $0x34] sm:$0xf]
      %v1343 = vld [vmem:[%s296 + $0x38] sm:$0xf]
      %v1344 = vld [vmem:[%s296 + $0x3c] sm:$0xf]
      %s1345 = sshra.s32 %s1312, 4
      %s1346 = sand.u32 %s1312, 15
      %s1347 = smul.addr %s1345, 8
      %s1348 = scalar_lea.vmem [#allocation3], %s1347
      %v1349 = vld [vmem:[%s1348] sm:$0xff]
      %v1350 = vld [vmem:[%s1348 + $0x8] sm:$0xff]
      %v1351 = vld [vmem:[%s1348 + $0x10] sm:$0xff]
      %v1352 = vld [vmem:[%s1348 + $0x18] sm:$0xff]
      %v1353 = vld [vmem:[%s1348 + $0x20] sm:$0xff]
      %v1354 = vld [vmem:[%s1348 + $0x28] sm:$0xff]
      %v1355 = vld [vmem:[%s1348 + $0x30] sm:$0xff]
      %v1356 = vld [vmem:[%s1348 + $0x38] sm:$0xff]
      %v1373 = vunpack.c.l.b16 %v1329
      %v1374 = vunpack.c.l.b16 %v1330
      %v1375 = vunpack.c.l.b16 %v1331
      %v1376 = vunpack.c.l.b16 %v1332
      %v1377 = vunpack.c.l.b16 %v1333
      %v1378 = vunpack.c.l.b16 %v1334
      %v1379 = vunpack.c.l.b16 %v1335
      %v1380 = vunpack.c.l.b16 %v1336
      %v1381 = vunpack.c.l.b16 %v1337
      %v1382 = vunpack.c.l.b16 %v1338
      %v1383 = vunpack.c.l.b16 %v1339
      %v1384 = vunpack.c.l.b16 %v1340
      %v1385 = vunpack.c.l.b16 %v1341
      %v1386 = vunpack.c.l.b16 %v1342
      %v1387 = vunpack.c.l.b16 %v1343
      %v1388 = vunpack.c.l.b16 %v1344
      %v1389 = vpack.c.b16 %v1374, %v1373
      %v1390 = vpack.c.b16 %v1376, %v1375
      %v1391 = vpack.c.b16 %v1378, %v1377
      %v1392 = vpack.c.b16 %v1380, %v1379
      %v1393 = vpack.c.b16 %v1382, %v1381
      %v1394 = vpack.c.b16 %v1384, %v1383
      %v1395 = vpack.c.b16 %v1386, %v1385
      %v1396 = vpack.c.b16 %v1388, %v1387
      %1405 = vmatprep.subr.bf16.mxu0 0
      %1406 = vmatpush1.bf16.msra.mxu0 %v1349
      %1407 = vmatprep.subr.bf16.mxu0 0
      %1408 = vmatpush1.bf16.msra.mxu0 %v1350
      %1409 = vmatprep.subr.bf16.mxu0 0
      %1410 = vmatpush1.bf16.msra.mxu0 %v1351
      %1411 = vmatprep.subr.bf16.mxu0 0
      %1412 = vmatpush1.bf16.msra.mxu0 %v1352
      %1413 = vmatprep.subr.bf16.mxu0 0
      %1414 = vmatpush1.bf16.msra.mxu0 %v1353
      %1415 = vmatprep.subr.bf16.mxu0 0
      %1416 = vmatpush1.bf16.msra.mxu0 %v1354
      %1417 = vmatprep.subr.bf16.mxu0 0
      %1418 = vmatpush1.bf16.msra.mxu0 %v1355
      %1419 = vmatprep.subr.bf16.mxu0 0
      %1420 = vmatpush1.bf16.msra.mxu0 %v1356
      %1421 = vmatprep.subr.bf16.mxu0 0
      %1422 = vmatpush1.bf16.msra.mxu0 0
      %1423 = vmatprep.subr.bf16.mxu0 0
      %1424 = vmatpush1.bf16.msra.mxu0 0
      %1425 = vmatprep.subr.bf16.mxu0 0
      %1426 = vmatpush1.bf16.msra.mxu0 0
      %1427 = vmatprep.subr.bf16.mxu0 0
      %1428 = vmatpush1.bf16.msra.mxu0 0
      %1429 = vmatprep.subr.bf16.mxu0 0
      %1430 = vmatpush1.bf16.msra.mxu0 0
      %1431 = vmatprep.subr.bf16.mxu0 0
      %1432 = vmatpush1.bf16.msra.mxu0 0
      %1433 = vmatprep.subr.bf16.mxu0 0
      %1434 = vmatpush1.bf16.msra.mxu0 0
      %1435 = vmatprep.subr.bf16.mxu0 0
      %1436 = vmatpush1.bf16.msra.mxu0 0
      %1437 = vmatprep.mubr.bf16.mxu0 0
      %1438 = vmatmul.mubr.bf16.gmra.mrb[0].mxu0 %v1389
      %v1439 = vpop.f32.mrb[0].mxu0
      %v1440 = vadd.f32 0.0, %v1439
      %v1441 = vpop.f32.mrb[0].mxu0
      %v1442 = vpop.f32.mrb[0].mxu0
      %v1443 = vadd.f32 0.0, %v1442
      %v1444 = vpop.f32.mrb[0].mxu0
      %1445 = vmatprep.mubr.bf16.mxu0 0
      %1446 = vmatmul.mubr.bf16.gmra.mrb[0].mxu0 %v1390
      %v1447 = vpop.f32.mrb[0].mxu0
      %v1448 = vadd.f32 0.0, %v1447
      %v1449 = vpop.f32.mrb[0].mxu0
      %v1450 = vpop.f32.mrb[0].mxu0
      %v1451 = vadd.f32 0.0, %v1450
      %v1452 = vpop.f32.mrb[0].mxu0
      %1453 = vmatprep.mubr.bf16.mxu0 0
      %1454 = vmatmul.mubr.bf16.gmra.mrb[0].mxu0 %v1391
      %v1455 = vpop.f32.mrb[0].mxu0
      %v1456 = vadd.f32 0.0, %v1455
      %v1457 = vpop.f32.mrb[0].mxu0
      %v1458 = vpop.f32.mrb[0].mxu0
      %v1459 = vadd.f32 0.0, %v1458
      %v1460 = vpop.f32.mrb[0].mxu0
      %1461 = vmatprep.mubr.bf16.mxu0 0
      %1462 = vmatmul.mubr.bf16.gmra.mrb[0].mxu0 %v1392
      %v1463 = vpop.f32.mrb[0].mxu0
      %v1464 = vadd.f32 0.0, %v1463
      %v1465 = vpop.f32.mrb[0].mxu0
      %v1466 = vpop.f32.mrb[0].mxu0
      %v1467 = vadd.f32 0.0, %v1466
      %v1468 = vpop.f32.mrb[0].mxu0
      %1469 = vmatprep.mubr.bf16.mxu0 0
      %1470 = vmatmul.mubr.bf16.gmra.mrb[0].mxu0 %v1393
      %v1471 = vpop.f32.mrb[0].mxu0
      %v1472 = vadd.f32 0.0, %v1471
      %v1473 = vpop.f32.mrb[0].mxu0
      %v1474 = vpop.f32.mrb[0].mxu0
      %v1475 = vadd.f32 0.0, %v1474
      %v1476 = vpop.f32.mrb[0].mxu0
      %1477 = vmatprep.mubr.bf16.mxu0 0
      %1478 = vmatmul.mubr.bf16.gmra.mrb[0].mxu0 %v1394
      %v1479 = vpop.f32.mrb[0].mxu0
      %v1480 = vadd.f32 0.0, %v1479
      %v1481 = vpop.f32.mrb[0].mxu0
      %v1482 = vpop.f32.mrb[0].mxu0
      %v1483 = vadd.f32 0.0, %v1482
      %v1484 = vpop.f32.mrb[0].mxu0
      %1485 = vmatprep.mubr.bf16.mxu0 0
      %1486 = vmatmul.mubr.bf16.gmra.mrb[0].mxu0 %v1395
      %v1487 = vpop.f32.mrb[0].mxu0
      %v1488 = vadd.f32 0.0, %v1487
      %v1489 = vpop.f32.mrb[0].mxu0
      %v1490 = vpop.f32.mrb[0].mxu0
      %v1491 = vadd.f32 0.0, %v1490
      %v1492 = vpop.f32.mrb[0].mxu0
      %1493 = vmatprep.mubr.bf16.mxu0 0
      %1494 = vmatmul.mubr.bf16.gmra.mrb[0].mxu0 %v1396
      %v1495 = vpop.f32.mrb[0].mxu0
      %v1496 = vadd.f32 0.0, %v1495
      %v1497 = vpop.f32.mrb[0].mxu0
      %v1498 = vpop.f32.mrb[0].mxu0
      %v1499 = vadd.f32 0.0, %v1498
      %v1500 = vpop.f32.mrb[0].mxu0
      %1501 = vdwg.mxu0
      %v1502 = vadd.f32 %v1313, %v1440
      %v1503 = vadd.f32 %v1314, %v1443
      %v1504 = vadd.f32 %v1315, %v1448
      %v1505 = vadd.f32 %v1316, %v1451
      %v1506 = vadd.f32 %v1317, %v1456
      %v1507 = vadd.f32 %v1318, %v1459
      %v1508 = vadd.f32 %v1319, %v1464
      %v1509 = vadd.f32 %v1320, %v1467
      %v1510 = vadd.f32 %v1321, %v1472
      %v1511 = vadd.f32 %v1322, %v1475
      %v1512 = vadd.f32 %v1323, %v1480
      %v1513 = vadd.f32 %v1324, %v1483
      %v1514 = vadd.f32 %v1325, %v1488
      %v1515 = vadd.f32 %v1326, %v1491
      %v1516 = vadd.f32 %v1327, %v1496
      %v1517 = vadd.f32 %v1328, %v1499
      %1518 = vst [vmem:[#allocation4] sm:$0xff] %v1502
      %1519 = vst [vmem:[#allocation4 + $0x8] sm:$0xff] %v1503
      %1520 = vst [vmem:[#allocation4 + $0x10] sm:$0xff] %v1504
      %1521 = vst [vmem:[#allocation4 + $0x18] sm:$0xff] %v1505
      %1522 = vst [vmem:[#allocation4 + $0x20] sm:$0xff] %v1506
      %1523 = vst [vmem:[#allocation4 + $0x28] sm:$0xff] %v1507
      %1524 = vst [vmem:[#allocation4 + $0x30] sm:$0xff] %v1508
      %1525 = vst [vmem:[#allocation4 + $0x38] sm:$0xff] %v1509
      %1526 = vst [vmem:[#allocation4 + $0x40] sm:$0xff] %v1510
      %1527 = vst [vmem:[#allocation4 + $0x48] sm:$0xff] %v1511
      %1528 = vst [vmem:[#allocation4 + $0x50] sm:$0xff] %v1512
      %1529 = vst [vmem:[#allocation4 + $0x58] sm:$0xff] %v1513
      %1530 = vst [vmem:[#allocation4 + $0x60] sm:$0xff] %v1514
      %1531 = vst [vmem:[#allocation4 + $0x68] sm:$0xff] %v1515
      %1532 = vst [vmem:[#allocation4 + $0x70] sm:$0xff] %v1516
      %1533 = vst [vmem:[#allocation4 + $0x78] sm:$0xff] %v1517
      // Predicated region
      $region53: #{evolve_gcno_forward_sequence.1} parent=39 // pred_check
        %p1534 = pneg %p315
      $region54: #{evolve_gcno_forward_sequence.1} parent=39 // pred_check_branch
        %1536 = sbr.rel (%p1534) target = $region56
      $region55: #{evolve_gcno_forward_sequence.1} parent=39 // pred_region
        %v1537 = vld [vmem:[#allocation4] sm:$0xff]
        %v1538 = vld [vmem:[#allocation4 + $0x8] sm:$0xff]
        %v1539 = vld [vmem:[#allocation4 + $0x10] sm:$0xff]
        %v1540 = vld [vmem:[#allocation4 + $0x18] sm:$0xff]
        %v1541 = vld [vmem:[#allocation4 + $0x20] sm:$0xff]
        %v1542 = vld [vmem:[#allocation4 + $0x28] sm:$0xff]
        %v1543 = vld [vmem:[#allocation4 + $0x30] sm:$0xff]
        %v1544 = vld [vmem:[#allocation4 + $0x38] sm:$0xff]
        %v1545 = vld [vmem:[#allocation4 + $0x40] sm:$0xff]
        %v1546 = vld [vmem:[#allocation4 + $0x48] sm:$0xff]
        %v1547 = vld [vmem:[#allocation4 + $0x50] sm:$0xff]
        %v1548 = vld [vmem:[#allocation4 + $0x58] sm:$0xff]
        %v1549 = vld [vmem:[#allocation4 + $0x60] sm:$0xff]
        %v1550 = vld [vmem:[#allocation4 + $0x68] sm:$0xff]
        %v1551 = vld [vmem:[#allocation4 + $0x70] sm:$0xff]
        %v1552 = vld [vmem:[#allocation4 + $0x78] sm:$0xff]
        %1553 = vst [vmem:[%s311] sm:$0xff] %v1537
        %1554 = vst [vmem:[%s311 + $0x8] sm:$0xff] %v1538
        %1555 = vst [vmem:[%s311 + $0x10] sm:$0xff] %v1539
        %1556 = vst [vmem:[%s311 + $0x18] sm:$0xff] %v1540
        %1557 = vst [vmem:[%s311 + $0x20] sm:$0xff] %v1541
        %1558 = vst [vmem:[%s311 + $0x28] sm:$0xff] %v1542
        %1559 = vst [vmem:[%s311 + $0x30] sm:$0xff] %v1543
        %1560 = vst [vmem:[%s311 + $0x38] sm:$0xff] %v1544
        %1561 = vst [vmem:[%s311 + $0x40] sm:$0xff] %v1545
        %1562 = vst [vmem:[%s311 + $0x48] sm:$0xff] %v1546
        %1563 = vst [vmem:[%s311 + $0x50] sm:$0xff] %v1547
        %1564 = vst [vmem:[%s311 + $0x58] sm:$0xff] %v1548
        %1565 = vst [vmem:[%s311 + $0x60] sm:$0xff] %v1549
        %1566 = vst [vmem:[%s311 + $0x68] sm:$0xff] %v1550
        %1567 = vst [vmem:[%s311 + $0x70] sm:$0xff] %v1551
        %1568 = vst [vmem:[%s311 + $0x78] sm:$0xff] %v1552
      $region56: #{evolve_gcno_forward_sequence.1} parent=39 // pred_fallthru
        _
      %s1569 = smul.u32 16, %s24
      %p1570 = scmp.lt.s32.totalorder %s23, 7
      %s1571 = scalar_select %p1570, %s23, 7
      %p1572 = scmp.lt.s32.totalorder %s1569, 15
      %s1573 = scalar_select %p1572, %s1569, 15
      %s1574 = smul.addr %s1571, 16
      %s1575 = sadd.s32 %s1573, %s1574
      %s1576 = smul.addr %s1575, 8
      %s1577 = scalar_lea.vmem %s5, %s1576
      // Predicated region
      $region57: #{evolve_gcno_forward_sequence.1} parent=39 // pred_check
        %p1578 = pneg %p174
      $region58: #{evolve_gcno_forward_sequence.1} parent=39 // pred_check_branch
        %1580 = sbr.rel (%p1578) target = $region60
      $region59: #{evolve_gcno_forward_sequence.1} parent=39 // pred_region
        %s1581 = smul.u32 16, %s24
      $region60: #{evolve_gcno_forward_sequence.1} parent=39 // pred_fallthru
        _
      // Predicated region
      $region61: #{evolve_gcno_forward_sequence.1} parent=39 // pred_check
        %p1582 = pneg %p195
      $region62: #{evolve_gcno_forward_sequence.1} parent=39 // pred_check_branch
        %1584 = sbr.rel (%p1582) target = $region64
      $region63: #{evolve_gcno_forward_sequence.1} parent=39 // pred_region
        _
      $region64: #{evolve_gcno_forward_sequence.1} parent=39 // pred_fallthru
        _
      // Predicated region
      $region65: #{evolve_gcno_forward_sequence.1} parent=39 // pred_check
        %p1585 = pneg %p195
      $region66: #{evolve_gcno_forward_sequence.1} parent=39 // pred_check_branch
        %1587 = sbr.rel (%p1585) target = $region68
      $region67: #{evolve_gcno_forward_sequence.1} parent=39 // pred_region
        _
      $region68: #{evolve_gcno_forward_sequence.1} parent=39 // pred_fallthru
        _
    $region40: #{evolve_gcno_forward_sequence.1} parent=5 // pred_fallthru
      _
    %p1588 = scmp.le.s32.totalorder 2, %s13
    // Predicated region
    $region69: #{evolve_gcno_forward_sequence.1} parent=5 // pred_check
      %p1589 = pneg %p1588
    $region70: #{evolve_gcno_forward_sequence.1} parent=5 // pred_check_branch
      %1591 = sbr.rel (%p1589) target = $region72
    $region71: #{evolve_gcno_forward_sequence.1} parent=5 // pred_region
      %s1592 = ssub.s32 %s13, 2
      // Predicated region
      $region73: #{evolve_gcno_forward_sequence.1} parent=71 // pred_check
        %p1593 = pneg %p180
      $region74: #{evolve_gcno_forward_sequence.1} parent=71 // pred_check_branch
        %1595 = sbr.rel (%p1593) target = $region76
      $region75: #{evolve_gcno_forward_sequence.1} parent=71 // pred_region
        %s1596 = smul.u32 16, %s27
        %p1597 = scmp.lt.s32.totalorder %s26, 7
        %s1598 = scalar_select %p1597, %s26, 7
        %p1599 = scmp.lt.s32.totalorder %s1596, 15
        %s1600 = scalar_select %p1599, %s1596, 15
        %s1601 = smul.addr %s1598, 16
        %s1602 = sadd.s32 %s1600, %s1601
        %s1603 = smul.addr %s1602, 8
        %s1604 = scalar_lea.vmem %s5, %s1603
      $region76: #{evolve_gcno_forward_sequence.1} parent=71 // pred_fallthru
        _
    $region72: #{evolve_gcno_forward_sequence.1} parent=5 // pred_fallthru
      _
  $region6: #{evolve_gcno_forward_sequence.1} parent=0 // loop_footer
    %s17 = sadd.s32 1, %s13
  $region7: #{evolve_gcno_forward_sequence.1} parent=0 // loop_footer_branch
    %12 = sbr.rel target = $region3
  $region8: #{evolve_gcno_forward_sequence.1} parent=0 // loop_exit
    _

</llo_original>
